<compile_context>
chip_gen: v7x
topology: tpu7x:2x2x1
jax: 0.10.0
libtpu: 0.0.40
codegen_flags: <defaults>
</compile_context>

<pallas_src>
import functools

import jax
import jax.numpy as jnp
import numpy as np
from jax.experimental import pallas as pl
from jax.experimental.pallas import tpu as pltpu


def _self_attn_kernel(x_ref, wqkv_ref, bqkv_ref, wo_ref, bo_ref, o_ref, *,
                      num_heads, head_dim, batch_tile, seq_len, embed_dim,
                      compute_dtype, approx_recip):
    H, d, Bt, S, E = num_heads, head_dim, batch_tile, seq_len, embed_dim
    rows = Bt * S
    scale = jnp.float32(1.0 / np.sqrt(d))

    # Fused QKV projection on the merged (Bt*S, E) row slab: one wide MXU pass.
    x = x_ref[...].astype(compute_dtype)                               # (rows, E)
    qkv = jnp.dot(x, wqkv_ref[...], preferred_element_type=jnp.float32)
    qkv = qkv + bqkv_ref[...]                                          # (rows, 3E) f32

    # Fold 1/sqrt(d) into q, and cast q/k/v to the compute dtype exactly once.
    q = (qkv[:, 0 * E:1 * E] * scale).astype(compute_dtype)
    k = qkv[:, 1 * E:2 * E].astype(compute_dtype)
    v = qkv[:, 2 * E:3 * E].astype(compute_dtype)

    wo = wo_ref[...]                                                   # (E, E)
    acc = jnp.zeros((rows, E), jnp.float32)                            # out-proj accumulator

    # Per-head loop; each head's contractions are batched over the Bt batch
    # elements (leading batch dim of dot_general), so the body is H chains of
    # large ops instead of the previous H*Bt unrolled chains.  Heads live in the
    # lane dim after the fused projection, so the per-head splits are static lane
    # slices (cheap, known-good); the reshapes below only split/merge leading dims.
    for h in range(H):
        c0 = h * d
        qh = q[:, c0:c0 + d].reshape(Bt, S, d)
        kh = k[:, c0:c0 + d].reshape(Bt, S, d)
        vh = v[:, c0:c0 + d].reshape(Bt, S, d)
        s = jnp.einsum("bqd,bkd->bqk", qh, kh,
                       preferred_element_type=jnp.float32)             # (Bt, S, S)
        m = jnp.max(s, axis=-1, keepdims=True)
        p = jnp.exp(s - m)                                             # unnormalized probs
        den = jnp.sum(p, axis=-1, keepdims=True)
        ctx = jnp.einsum("bqk,bkd->bqd", p.astype(compute_dtype), vh,
                         preferred_element_type=jnp.float32)           # (Bt, S, d)
        # Deferred softmax normalization: scale the (S, d) context, not the (S, S)
        # probabilities (EUP reciprocal, broadcast over d).
        ctx = ctx * pl.reciprocal(den, approx=approx_recip)
        # Accumulate the output projection per head: ctx_h @ Wo^T[h*d:(h+1)*d, :].
        acc = acc + jnp.dot(ctx.reshape(rows, d).astype(compute_dtype),
                            wo[c0:c0 + d, :],
                            preferred_element_type=jnp.float32)

    # TODO(synk): training-mode dropout (attention dropout + attn_dropout) and
    # key_padding_mask / need_weights=True are not implemented (eval-mode only).
    # TODO(synk): for large S, stream K/V blocks (online softmax) instead of the
    # full (Bt, S, S) scores, and split the grid along S when B == 1 so both v7x
    # TensorCores get work.
    o_ref[...] = (acc + bo_ref[...]).astype(o_ref.dtype)               # one dense slab store


def _const_spec(shape):
    """Grid-invariant operand: constant index_map + single-buffered pipeline."""
    idx = lambda g: (0,) * len(shape)
    try:
        return pl.BlockSpec(shape, idx, pipeline_mode=pl.Buffered(1))
    except TypeError:                      # older API without pipeline_mode
        return pl.BlockSpec(shape, idx)


def _chip_profile():
    """Per-TensorCore VMEM capacity and whether the chip has multiple TensorCores."""
    kind = ""
    try:
        kind = jax.devices()[0].device_kind.lower()
    except Exception:
        pass
    vmem_cap = None
    try:
        info = pltpu.get_tpu_info()
        vmem_cap = getattr(info, "vmem_capacity_bytes", None)
    except Exception:
        pass
    if vmem_cap is None:
        vmem_cap = (64 << 20) if "v7" in kind else (128 << 20)
    multi_tc = ("v7" in kind) or (int(vmem_cap) <= (64 << 20))
    return int(vmem_cap), multi_tc


def _vmem_footprint(bt, S, E, d, in_bytes, out_bytes, cbytes):
    """Per-grid-step VMEM estimate: pipelined blocks + weights + in-kernel temporaries."""
    rows = bt * S
    io = 2 * rows * E * (in_bytes + out_bytes)      # x & out blocks, double-buffered
    weights = 4 * E * E * cbytes + 4 * E * 4        # W_qkv^T + W_o^T (single-buffered) + biases
    tmp = (3 * rows * E * 4                         # f32 qkv slab
           + 3 * rows * E * cbytes                  # q/k/v compute-dtype copies
           + 2 * bt * S * S * 4                     # per-head scores + exp(p) (f32)
           + 2 * bt * S * d * 4                     # per-head context (+ cast margin)
           + 2 * rows * E * 4)                      # out-proj accumulator + f32 result
    return io + weights + tmp


def _pick_batch_tile(B, S, *, multi_tc, target_rows, fits):
    bt = max(1, min(B, max(1, target_rows // max(1, S))))
    if multi_tc:
        # Keep >=2 parallel grid steps so both TensorCores (v7x megacore) get work.
        while bt > 1 and pl.cdiv(B, bt) < 2:
            bt -= 1
    # Shrink until the per-step working set fits the VMEM budget.
    while bt > 1 and not fits(bt):
        bt -= 1
    # (Bt*S, E) blocks need a sublane-aligned row count (multiple of 8) unless a
    # single block covers the whole array.
    if (bt * S) % 8 != 0:
        grown = bt
        while grown < B and (grown * S) % 8 != 0:
            grown += 1
        bt = grown if (grown * S) % 8 == 0 else B
    return bt


def self_attn_block(x, params, *, num_heads, compute_dtype=jnp.bfloat16,
                    approx_recip=True):
    """Pallas implementation of SelfAttnBlock.forward (eval mode).

    x: (B, S, E).  Returns (x_embed, None) like the PyTorch module with
    need_weights=False.
    """
    B, S, E = x.shape
    assert E % num_heads == 0
    d = E // num_heads

    w_in = params["in_proj_weight"]      # (3E, E) rows = [Wq; Wk; Wv]
    b_in = params["in_proj_bias"]        # (3E,)
    w_out = params["out_proj_weight"]    # (E, E)
    b_out = params["out_proj_bias"]      # (E,)

    # x @ W^T layout: fused, pre-transposed weights (compute dtype), f32 biases.
    w_qkv_t = jnp.transpose(w_in).astype(compute_dtype)      # (E, 3E)
    w_o_t = jnp.transpose(w_out).astype(compute_dtype)       # (E, E)
    b_qkv = b_in.reshape(1, 3 * E).astype(jnp.float32)
    b_o = b_out.reshape(1, E).astype(jnp.float32)

    vmem_cap, multi_tc = _chip_profile()
    # Usable budget with headroom for Mosaic internal scratch/semaphores:
    # ~56 MiB on a 64 MiB-VMEM v7x TensorCore, ~112 MiB on 128 MiB v5e/v6e.
    if vmem_cap <= (64 << 20):
        budget = vmem_cap - (8 << 20)
    else:
        budget = (vmem_cap * 7) // 8
    target_rows = 256 if multi_tc else 512    # fill the MXU's M on single-TC chips

    in_bytes = x.dtype.itemsize
    cbytes = jnp.dtype(compute_dtype).itemsize
    fits = lambda bt: _vmem_footprint(bt, S, E, d, in_bytes, in_bytes, cbytes) <= budget
    Bt = _pick_batch_tile(B, S, multi_tc=multi_tc, target_rows=target_rows, fits=fits)

    # Ragged batch: zero-pad wrapper-side (self-attention rows are independent)
    # and drop the extra rows afterwards, keeping the large-M fast path instead
    # of collapsing Bt to 1.
    Bp = pl.cdiv(B, Bt) * Bt
    x2 = x.reshape(B * S, E)
    if Bp != B:
        x2 = jnp.pad(x2, ((0, (Bp - B) * S), (0, 0)))

    est = _vmem_footprint(Bt, S, E, d, in_bytes, in_bytes, cbytes)
    vmem_limit = int(min(budget, max(32 << 20, 2 * est)))

    grid = (Bp // Bt,)

    kernel = functools.partial(
        _self_attn_kernel, num_heads=num_heads, head_dim=d, batch_tile=Bt,
        seq_len=S, embed_dim=E, compute_dtype=compute_dtype,
        approx_recip=approx_recip)

    out2 = pl.pallas_call(
        kernel,
        out_shape=jax.ShapeDtypeStruct((Bp * S, E), x.dtype),
        grid_spec=pltpu.PrefetchScalarGridSpec(
            num_scalar_prefetch=0,
            grid=grid,
            in_specs=[
                pl.BlockSpec((Bt * S, E), lambda g: (g, 0)),   # x row slab
                _const_spec((E, 3 * E)),                       # fused W_qkv^T
                _const_spec((1, 3 * E)),                       # fused b_qkv
                _const_spec((E, E)),                           # W_o^T
                _const_spec((1, E)),                           # b_o
            ],
            out_specs=pl.BlockSpec((Bt * S, E), lambda g: (g, 0)),
        ),
        compiler_params=pltpu.CompilerParams(
            dimension_semantics=("parallel",),
            vmem_limit_bytes=vmem_limit),
    )(x2, w_qkv_t, b_qkv, w_o_t, b_o)

    x_embed = out2[:B * S].reshape(B, S, E)
    return x_embed, None   # need_weights=False -> attn_weights is None


def _reference(x, params, num_heads):
    """Pure-JAX reference mirroring torch.nn.MultiheadAttention (eval)."""
    B, S, E = x.shape
    d = E // num_heads
    w_in, b_in = params["in_proj_weight"], params["in_proj_bias"]
    w_out, b_out = params["out_proj_weight"], params["out_proj_bias"]
    qkv = jnp.einsum("bse,fe->bsf", x, w_in) + b_in           # (B, S, 3E)
    q, k, v = jnp.split(qkv, 3, axis=-1)
    def split_heads(t):
        return t.reshape(B, S, num_heads, d).transpose(0, 2, 1, 3)
    qh, kh, vh = split_heads(q), split_heads(k), split_heads(v)
    s = jnp.einsum("bhqd,bhkd->bhqk", qh, kh) / jnp.sqrt(jnp.float32(d))
    p = jax.nn.softmax(s, axis=-1)
    ctx = jnp.einsum("bhqk,bhkd->bhqd", p, vh).transpose(0, 2, 1, 3).reshape(B, S, E)
    return jnp.einsum("bse,fe->bsf", ctx, w_out) + b_out


def init_params(key, embed_dim):
    """Deterministic init mimicking nn.MultiheadAttention's xavier/zeros init."""
    k1, k2 = jax.random.split(key)
    limit_in = np.sqrt(6.0 / (3 * embed_dim + embed_dim))
    in_proj_weight = jax.random.uniform(
        k1, (3 * embed_dim, embed_dim), jnp.float32, -limit_in, limit_in)
    in_proj_bias = jnp.zeros((3 * embed_dim,), jnp.float32)
    limit_out = np.sqrt(6.0 / (embed_dim + embed_dim))
    out_proj_weight = jax.random.uniform(
        k2, (embed_dim, embed_dim), jnp.float32, -limit_out, limit_out)
    out_proj_bias = jnp.zeros((embed_dim,), jnp.float32)
    return dict(in_proj_weight=in_proj_weight, in_proj_bias=in_proj_bias,
                out_proj_weight=out_proj_weight, out_proj_bias=out_proj_bias)


if __name__ == "__main__":
    # Small shapes consistent with the module: batch=2, seq=8, embed=32, heads=4.
    B, S, E, H = 2, 8, 32, 4
    key = jax.random.PRNGKey(0)
    kx, kp, kx2 = jax.random.split(key, 3)
    x = jax.random.normal(kx, (B, S, E), jnp.float32)
    params = init_params(kp, E)

    ref = _reference(x, params, H)

    # f32 MXU path: tight check against the pure-JAX reference.
    out_f32, attn_w = self_attn_block(x, params, num_heads=H,
                                      compute_dtype=jnp.float32,
                                      approx_recip=False)
    out_f32 = jax.block_until_ready(out_f32)
    np.testing.assert_allclose(np.asarray(out_f32), np.asarray(ref),
                               rtol=1e-4, atol=1e-4)
    assert attn_w is None

    # Default bf16-MXU path (f32 accumulation + f32 softmax): loose check.
    out_bf16, _ = self_attn_block(x, params, num_heads=H)
    out_bf16 = jax.block_until_ready(out_bf16)
    np.testing.assert_allclose(np.asarray(out_bf16), np.asarray(ref),
                               rtol=2e-2, atol=2e-2)

    # Ragged batch (B=3): exercises the zero-padded tail path (on multi-TC chips).
    x3 = jax.random.normal(kx2, (3, S, E), jnp.float32)
    ref3 = _reference(x3, params, H)
    out3, _ = self_attn_block(x3, params, num_heads=H,
                              compute_dtype=jnp.float32, approx_recip=False)
    out3 = jax.block_until_ready(out3)
    np.testing.assert_allclose(np.asarray(out3), np.asarray(ref3),
                               rtol=1e-4, atol=1e-4)

    print("KERNEL_OK")
</pallas_src>

<mosaic_0001>
module attributes {stable_mosaic.version = 11 : i64} {
  func.func @_self_attn_kernel(%arg0: i32, %arg1: memref<16x32xf32, #tpu.memory_space<vmem>>, %arg2: memref<32x96xf32, #tpu.memory_space<vmem>>, %arg3: memref<1x96xf32, #tpu.memory_space<vmem>>, %arg4: memref<32x32xf32, #tpu.memory_space<vmem>>, %arg5: memref<1x32xf32, #tpu.memory_space<vmem>>, %arg6: memref<16x32xf32, #tpu.memory_space<vmem>>) attributes {dimension_semantics = [#tpu.dimension_semantics<parallel>], iteration_bounds = array<i64: 1>, scalar_prefetch = 0 : i64, scratch_operands = 0 : i64, tpu.core_type = #tpu.core_type<tc>, window_params = [{transform_indices = @transform_0, window_bounds = array<i64: 16, 32>}, {pipeline_mode = #tpu.pipeline_mode<synchronous>, transform_indices = @transform_1, window_bounds = array<i64: 32, 96>}, {pipeline_mode = #tpu.pipeline_mode<synchronous>, transform_indices = @transform_2, window_bounds = array<i64: 1, 96>}, {pipeline_mode = #tpu.pipeline_mode<synchronous>, transform_indices = @transform_3, window_bounds = array<i64: 32, 32>}, {pipeline_mode = #tpu.pipeline_mode<synchronous>, transform_indices = @transform_4, window_bounds = array<i64: 1, 32>}, {transform_indices = @transform_5, window_bounds = array<i64: 16, 32>}]} {
    %c0 = arith.constant 0 : index
    %c0_0 = arith.constant 0 : index
    %0 = vector.load %arg1[%c0, %c0_0] : memref<16x32xf32, #tpu.memory_space<vmem>>, vector<16x32xf32>
    %c0_1 = arith.constant 0 : index
    %c0_2 = arith.constant 0 : index
    %1 = vector.load %arg2[%c0_1, %c0_2] : memref<32x96xf32, #tpu.memory_space<vmem>>, vector<32x96xf32>
    %cst = arith.constant dense<0.000000e+00> : vector<16x96xf32>
    %2 = tpu.matmul %0, %1, %cst {dimension_numbers = #tpu.dot_dimension_numbers<[1], [0], [0], [1], [0, 0, 1, 1], [], []>} : vector<16x32xf32>, vector<32x96xf32>, vector<16x96xf32> -> vector<16x96xf32>
    %c0_3 = arith.constant 0 : index
    %c0_4 = arith.constant 0 : index
    %3 = vector.load %arg3[%c0_3, %c0_4] : memref<1x96xf32, #tpu.memory_space<vmem>>, vector<1x96xf32>
    %4 = vector.broadcast %3 : vector<1x96xf32> to vector<16x96xf32>
    %5 = arith.addf %2, %4 : vector<16x96xf32>
    %6 = vector.extract_strided_slice %5 {offsets = [0, 0], sizes = [16, 32], strides = [1, 1]} : vector<16x96xf32> to vector<16x32xf32>
    %cst_5 = arith.constant 0.353553385 : f32
    %7 = vector.broadcast %cst_5 : f32 to vector<16x32xf32>
    %8 = arith.mulf %6, %7 : vector<16x32xf32>
    %9 = vector.extract_strided_slice %5 {offsets = [0, 32], sizes = [16, 32], strides = [1, 1]} : vector<16x96xf32> to vector<16x32xf32>
    %10 = vector.extract_strided_slice %5 {offsets = [0, 64], sizes = [16, 32], strides = [1, 1]} : vector<16x96xf32> to vector<16x32xf32>
    %c0_6 = arith.constant 0 : index
    %c0_7 = arith.constant 0 : index
    %11 = vector.load %arg4[%c0_6, %c0_7] : memref<32x32xf32, #tpu.memory_space<vmem>>, vector<32x32xf32>
    %cst_8 = arith.constant 0.000000e+00 : f32
    %12 = vector.broadcast %cst_8 : f32 to vector<16x32xf32>
    %13 = vector.extract_strided_slice %8 {offsets = [0, 0], sizes = [16, 8], strides = [1, 1]} : vector<16x32xf32> to vector<16x8xf32>
    %14 = vector.shape_cast %13 : vector<16x8xf32> to vector<2x8x8xf32>
    %15 = vector.extract_strided_slice %9 {offsets = [0, 0], sizes = [16, 8], strides = [1, 1]} : vector<16x32xf32> to vector<16x8xf32>
    %16 = vector.shape_cast %15 : vector<16x8xf32> to vector<2x8x8xf32>
    %17 = vector.extract_strided_slice %10 {offsets = [0, 0], sizes = [16, 8], strides = [1, 1]} : vector<16x32xf32> to vector<16x8xf32>
    %18 = vector.shape_cast %17 : vector<16x8xf32> to vector<2x8x8xf32>
    "tpu.trace_start"() <{level = 10 : i32, message = "bqd,bkd->bqk"}> : () -> ()
    %cst_9 = arith.constant dense<0.000000e+00> : vector<2x8x8xf32>
    %19 = tpu.matmul %14, %16, %cst_9 {dimension_numbers = #tpu.dot_dimension_numbers<[2], [2], [1], [1], [0, 0, 0, 1, 1, 1], [0], [0]>} : vector<2x8x8xf32>, vector<2x8x8xf32>, vector<2x8x8xf32> -> vector<2x8x8xf32>
    "tpu.trace_stop"() : () -> ()
    %cst_10 = arith.constant dense<0xFF800000> : vector<2x8xf32>
    %20 = vector.multi_reduction <maximumf>, %19, %cst_10 [2] : vector<2x8x8xf32> to vector<2x8xf32>
    %21 = vector.shape_cast %20 : vector<2x8xf32> to vector<2x8x1xf32>
    %22 = vector.broadcast %21 : vector<2x8x1xf32> to vector<2x8x8xf32>
    %23 = arith.subf %19, %22 : vector<2x8x8xf32>
    %24 = math.exp %23 : vector<2x8x8xf32>
    %cst_11 = arith.constant dense<0.000000e+00> : vector<2x8xf32>
    %25 = vector.multi_reduction <add>, %24, %cst_11 [2] : vector<2x8x8xf32> to vector<2x8xf32>
    %26 = vector.shape_cast %25 : vector<2x8xf32> to vector<2x8x1xf32>
    "tpu.trace_start"() <{level = 10 : i32, message = "bqk,bkd->bqd"}> : () -> ()
    %cst_12 = arith.constant dense<0.000000e+00> : vector<2x8x8xf32>
    %27 = tpu.matmul %24, %18, %cst_12 {dimension_numbers = #tpu.dot_dimension_numbers<[2], [1], [1], [2], [0, 0, 0, 1, 1, 2], [0], [0]>} : vector<2x8x8xf32>, vector<2x8x8xf32>, vector<2x8x8xf32> -> vector<2x8x8xf32>
    "tpu.trace_stop"() : () -> ()
    %28 = tpu.reciprocal %26 : vector<2x8x1xf32> -> vector<2x8x1xf32>
    %29 = vector.broadcast %28 : vector<2x8x1xf32> to vector<2x8x8xf32>
    %30 = arith.mulf %27, %29 : vector<2x8x8xf32>
    %31 = vector.shape_cast %30 : vector<2x8x8xf32> to vector<16x8xf32>
    %32 = vector.extract_strided_slice %11 {offsets = [0, 0], sizes = [8, 32], strides = [1, 1]} : vector<32x32xf32> to vector<8x32xf32>
    %cst_13 = arith.constant dense<0.000000e+00> : vector<16x32xf32>
    %33 = tpu.matmul %31, %32, %cst_13 {dimension_numbers = #tpu.dot_dimension_numbers<[1], [0], [0], [1], [0, 0, 1, 1], [], []>} : vector<16x8xf32>, vector<8x32xf32>, vector<16x32xf32> -> vector<16x32xf32>
    %34 = arith.addf %12, %33 : vector<16x32xf32>
    %35 = vector.extract_strided_slice %8 {offsets = [0, 8], sizes = [16, 8], strides = [1, 1]} : vector<16x32xf32> to vector<16x8xf32>
    %36 = vector.shape_cast %35 : vector<16x8xf32> to vector<2x8x8xf32>
    %37 = vector.extract_strided_slice %9 {offsets = [0, 8], sizes = [16, 8], strides = [1, 1]} : vector<16x32xf32> to vector<16x8xf32>
    %38 = vector.shape_cast %37 : vector<16x8xf32> to vector<2x8x8xf32>
    %39 = vector.extract_strided_slice %10 {offsets = [0, 8], sizes = [16, 8], strides = [1, 1]} : vector<16x32xf32> to vector<16x8xf32>
    %40 = vector.shape_cast %39 : vector<16x8xf32> to vector<2x8x8xf32>
    "tpu.trace_start"() <{level = 10 : i32, message = "bqd,bkd->bqk"}> : () -> ()
    %cst_14 = arith.constant dense<0.000000e+00> : vector<2x8x8xf32>
    %41 = tpu.matmul %36, %38, %cst_14 {dimension_numbers = #tpu.dot_dimension_numbers<[2], [2], [1], [1], [0, 0, 0, 1, 1, 1], [0], [0]>} : vector<2x8x8xf32>, vector<2x8x8xf32>, vector<2x8x8xf32> -> vector<2x8x8xf32>
    "tpu.trace_stop"() : () -> ()
    %cst_15 = arith.constant dense<0xFF800000> : vector<2x8xf32>
    %42 = vector.multi_reduction <maximumf>, %41, %cst_15 [2] : vector<2x8x8xf32> to vector<2x8xf32>
    %43 = vector.shape_cast %42 : vector<2x8xf32> to vector<2x8x1xf32>
    %44 = vector.broadcast %43 : vector<2x8x1xf32> to vector<2x8x8xf32>
    %45 = arith.subf %41, %44 : vector<2x8x8xf32>
    %46 = math.exp %45 : vector<2x8x8xf32>
    %cst_16 = arith.constant dense<0.000000e+00> : vector<2x8xf32>
    %47 = vector.multi_reduction <add>, %46, %cst_16 [2] : vector<2x8x8xf32> to vector<2x8xf32>
    %48 = vector.shape_cast %47 : vector<2x8xf32> to vector<2x8x1xf32>
    "tpu.trace_start"() <{level = 10 : i32, message = "bqk,bkd->bqd"}> : () -> ()
    %cst_17 = arith.constant dense<0.000000e+00> : vector<2x8x8xf32>
    %49 = tpu.matmul %46, %40, %cst_17 {dimension_numbers = #tpu.dot_dimension_numbers<[2], [1], [1], [2], [0, 0, 0, 1, 1, 2], [0], [0]>} : vector<2x8x8xf32>, vector<2x8x8xf32>, vector<2x8x8xf32> -> vector<2x8x8xf32>
    "tpu.trace_stop"() : () -> ()
    %50 = tpu.reciprocal %48 : vector<2x8x1xf32> -> vector<2x8x1xf32>
    %51 = vector.broadcast %50 : vector<2x8x1xf32> to vector<2x8x8xf32>
    %52 = arith.mulf %49, %51 : vector<2x8x8xf32>
    %53 = vector.shape_cast %52 : vector<2x8x8xf32> to vector<16x8xf32>
    %54 = vector.extract_strided_slice %11 {offsets = [8, 0], sizes = [8, 32], strides = [1, 1]} : vector<32x32xf32> to vector<8x32xf32>
    %cst_18 = arith.constant dense<0.000000e+00> : vector<16x32xf32>
    %55 = tpu.matmul %53, %54, %cst_18 {dimension_numbers = #tpu.dot_dimension_numbers<[1], [0], [0], [1], [0, 0, 1, 1], [], []>} : vector<16x8xf32>, vector<8x32xf32>, vector<16x32xf32> -> vector<16x32xf32>
    %56 = arith.addf %34, %55 : vector<16x32xf32>
    %57 = vector.extract_strided_slice %8 {offsets = [0, 16], sizes = [16, 8], strides = [1, 1]} : vector<16x32xf32> to vector<16x8xf32>
    %58 = vector.shape_cast %57 : vector<16x8xf32> to vector<2x8x8xf32>
    %59 = vector.extract_strided_slice %9 {offsets = [0, 16], sizes = [16, 8], strides = [1, 1]} : vector<16x32xf32> to vector<16x8xf32>
    %60 = vector.shape_cast %59 : vector<16x8xf32> to vector<2x8x8xf32>
    %61 = vector.extract_strided_slice %10 {offsets = [0, 16], sizes = [16, 8], strides = [1, 1]} : vector<16x32xf32> to vector<16x8xf32>
    %62 = vector.shape_cast %61 : vector<16x8xf32> to vector<2x8x8xf32>
    "tpu.trace_start"() <{level = 10 : i32, message = "bqd,bkd->bqk"}> : () -> ()
    %cst_19 = arith.constant dense<0.000000e+00> : vector<2x8x8xf32>
    %63 = tpu.matmul %58, %60, %cst_19 {dimension_numbers = #tpu.dot_dimension_numbers<[2], [2], [1], [1], [0, 0, 0, 1, 1, 1], [0], [0]>} : vector<2x8x8xf32>, vector<2x8x8xf32>, vector<2x8x8xf32> -> vector<2x8x8xf32>
    "tpu.trace_stop"() : () -> ()
    %cst_20 = arith.constant dense<0xFF800000> : vector<2x8xf32>
    %64 = vector.multi_reduction <maximumf>, %63, %cst_20 [2] : vector<2x8x8xf32> to vector<2x8xf32>
    %65 = vector.shape_cast %64 : vector<2x8xf32> to vector<2x8x1xf32>
    %66 = vector.broadcast %65 : vector<2x8x1xf32> to vector<2x8x8xf32>
    %67 = arith.subf %63, %66 : vector<2x8x8xf32>
    %68 = math.exp %67 : vector<2x8x8xf32>
    %cst_21 = arith.constant dense<0.000000e+00> : vector<2x8xf32>
    %69 = vector.multi_reduction <add>, %68, %cst_21 [2] : vector<2x8x8xf32> to vector<2x8xf32>
    %70 = vector.shape_cast %69 : vector<2x8xf32> to vector<2x8x1xf32>
    "tpu.trace_start"() <{level = 10 : i32, message = "bqk,bkd->bqd"}> : () -> ()
    %cst_22 = arith.constant dense<0.000000e+00> : vector<2x8x8xf32>
    %71 = tpu.matmul %68, %62, %cst_22 {dimension_numbers = #tpu.dot_dimension_numbers<[2], [1], [1], [2], [0, 0, 0, 1, 1, 2], [0], [0]>} : vector<2x8x8xf32>, vector<2x8x8xf32>, vector<2x8x8xf32> -> vector<2x8x8xf32>
    "tpu.trace_stop"() : () -> ()
    %72 = tpu.reciprocal %70 : vector<2x8x1xf32> -> vector<2x8x1xf32>
    %73 = vector.broadcast %72 : vector<2x8x1xf32> to vector<2x8x8xf32>
    %74 = arith.mulf %71, %73 : vector<2x8x8xf32>
    %75 = vector.shape_cast %74 : vector<2x8x8xf32> to vector<16x8xf32>
    %76 = vector.extract_strided_slice %11 {offsets = [16, 0], sizes = [8, 32], strides = [1, 1]} : vector<32x32xf32> to vector<8x32xf32>
    %cst_23 = arith.constant dense<0.000000e+00> : vector<16x32xf32>
    %77 = tpu.matmul %75, %76, %cst_23 {dimension_numbers = #tpu.dot_dimension_numbers<[1], [0], [0], [1], [0, 0, 1, 1], [], []>} : vector<16x8xf32>, vector<8x32xf32>, vector<16x32xf32> -> vector<16x32xf32>
    %78 = arith.addf %56, %77 : vector<16x32xf32>
    %79 = vector.extract_strided_slice %8 {offsets = [0, 24], sizes = [16, 8], strides = [1, 1]} : vector<16x32xf32> to vector<16x8xf32>
    %80 = vector.shape_cast %79 : vector<16x8xf32> to vector<2x8x8xf32>
    %81 = vector.extract_strided_slice %9 {offsets = [0, 24], sizes = [16, 8], strides = [1, 1]} : vector<16x32xf32> to vector<16x8xf32>
    %82 = vector.shape_cast %81 : vector<16x8xf32> to vector<2x8x8xf32>
    %83 = vector.extract_strided_slice %10 {offsets = [0, 24], sizes = [16, 8], strides = [1, 1]} : vector<16x32xf32> to vector<16x8xf32>
    %84 = vector.shape_cast %83 : vector<16x8xf32> to vector<2x8x8xf32>
    "tpu.trace_start"() <{level = 10 : i32, message = "bqd,bkd->bqk"}> : () -> ()
    %cst_24 = arith.constant dense<0.000000e+00> : vector<2x8x8xf32>
    %85 = tpu.matmul %80, %82, %cst_24 {dimension_numbers = #tpu.dot_dimension_numbers<[2], [2], [1], [1], [0, 0, 0, 1, 1, 1], [0], [0]>} : vector<2x8x8xf32>, vector<2x8x8xf32>, vector<2x8x8xf32> -> vector<2x8x8xf32>
    "tpu.trace_stop"() : () -> ()
    %cst_25 = arith.constant dense<0xFF800000> : vector<2x8xf32>
    %86 = vector.multi_reduction <maximumf>, %85, %cst_25 [2] : vector<2x8x8xf32> to vector<2x8xf32>
    %87 = vector.shape_cast %86 : vector<2x8xf32> to vector<2x8x1xf32>
    %88 = vector.broadcast %87 : vector<2x8x1xf32> to vector<2x8x8xf32>
    %89 = arith.subf %85, %88 : vector<2x8x8xf32>
    %90 = math.exp %89 : vector<2x8x8xf32>
    %cst_26 = arith.constant dense<0.000000e+00> : vector<2x8xf32>
    %91 = vector.multi_reduction <add>, %90, %cst_26 [2] : vector<2x8x8xf32> to vector<2x8xf32>
    %92 = vector.shape_cast %91 : vector<2x8xf32> to vector<2x8x1xf32>
    "tpu.trace_start"() <{level = 10 : i32, message = "bqk,bkd->bqd"}> : () -> ()
    %cst_27 = arith.constant dense<0.000000e+00> : vector<2x8x8xf32>
    %93 = tpu.matmul %90, %84, %cst_27 {dimension_numbers = #tpu.dot_dimension_numbers<[2], [1], [1], [2], [0, 0, 0, 1, 1, 2], [0], [0]>} : vector<2x8x8xf32>, vector<2x8x8xf32>, vector<2x8x8xf32> -> vector<2x8x8xf32>
    "tpu.trace_stop"() : () -> ()
    %94 = tpu.reciprocal %92 : vector<2x8x1xf32> -> vector<2x8x1xf32>
    %95 = vector.broadcast %94 : vector<2x8x1xf32> to vector<2x8x8xf32>
    %96 = arith.mulf %93, %95 : vector<2x8x8xf32>
    %97 = vector.shape_cast %96 : vector<2x8x8xf32> to vector<16x8xf32>
    %98 = vector.extract_strided_slice %11 {offsets = [24, 0], sizes = [8, 32], strides = [1, 1]} : vector<32x32xf32> to vector<8x32xf32>
    %cst_28 = arith.constant dense<0.000000e+00> : vector<16x32xf32>
    %99 = tpu.matmul %97, %98, %cst_28 {dimension_numbers = #tpu.dot_dimension_numbers<[1], [0], [0], [1], [0, 0, 1, 1], [], []>} : vector<16x8xf32>, vector<8x32xf32>, vector<16x32xf32> -> vector<16x32xf32>
    %100 = arith.addf %78, %99 : vector<16x32xf32>
    %c0_29 = arith.constant 0 : index
    %c0_30 = arith.constant 0 : index
    %101 = vector.load %arg5[%c0_29, %c0_30] : memref<1x32xf32, #tpu.memory_space<vmem>>, vector<1x32xf32>
    %102 = vector.broadcast %101 : vector<1x32xf32> to vector<16x32xf32>
    %103 = arith.addf %100, %102 : vector<16x32xf32>
    %c0_31 = arith.constant 0 : index
    %c0_32 = arith.constant 0 : index
    %104 = vector.load %arg6[%c0_31, %c0_32] : memref<16x32xf32, #tpu.memory_space<vmem>>, vector<16x32xf32>
    tpu.vector_store %arg6[%c0_31, %c0_32], %103 {strides = array<i32>} : memref<16x32xf32, #tpu.memory_space<vmem>>, vector<16x32xf32>,
    return
  }
  func.func @transform_0(%arg0: i32) -> (i32, i32) {
    %c0_i32 = arith.constant 0 : i32
    %c0_i32_0 = arith.constant 0 : i32
    return %arg0, %c0_i32 : i32, i32
  }
  func.func @transform_1(%arg0: i32) -> (i32, i32) {
    %c0_i32 = arith.constant 0 : i32
    %c0_i32_0 = arith.constant 0 : i32
    %c0_i32_1 = arith.constant 0 : i32
    return %c0_i32, %c0_i32_0 : i32, i32
  }
  func.func @transform_2(%arg0: i32) -> (i32, i32) {
    %c0_i32 = arith.constant 0 : i32
    %c0_i32_0 = arith.constant 0 : i32
    %c0_i32_1 = arith.constant 0 : i32
    return %c0_i32, %c0_i32_0 : i32, i32
  }
  func.func @transform_3(%arg0: i32) -> (i32, i32) {
    %c0_i32 = arith.constant 0 : i32
    %c0_i32_0 = arith.constant 0 : i32
    %c0_i32_1 = arith.constant 0 : i32
    return %c0_i32, %c0_i32_0 : i32, i32
  }
  func.func @transform_4(%arg0: i32) -> (i32, i32) {
    %c0_i32 = arith.constant 0 : i32
    %c0_i32_0 = arith.constant 0 : i32
    %c0_i32_1 = arith.constant 0 : i32
    return %c0_i32, %c0_i32_0 : i32, i32
  }
  func.func @transform_5(%arg0: i32) -> (i32, i32) {
    %c0_i32 = arith.constant 0 : i32
    %c0_i32_0 = arith.constant 0 : i32
    return %arg0, %c0_i32 : i32, i32
  }
}

</mosaic_0001>

<llo_original>
// kernel: tpu_custom_call.1
$region0: #{tpu_custom_call.1}
  #allocation0 [shape = 'u32[]', space=smem, size = 0x4, offset = 0x4, fixed_abs, tag = 'smem constant byte address 0x4 - core index']
  #allocation1 [shape = 'u32[144,128]{1,0:T(1,128)}', space=vmem, size = 0x12000, scoped, tag = 'internal scratch']
  %s0 = inlined_call_operand.hbm [shape: f32[16,32], index: 0, kind: input, shape index: {}]
  %s1 = inlined_call_operand.hbm [shape: f32[32,96], index: 1, kind: input, shape index: {}]
  %s2 = inlined_call_operand.vmem [shape: f32[1,96], index: 2, kind: input, shape index: {}]
  %s3 = inlined_call_operand.hbm [shape: f32[32,32], index: 3, kind: input, shape index: {}]
  %s4 = inlined_call_operand.vmem [shape: f32[1,32], index: 4, kind: input, shape index: {}]
  %s5 = inlined_call_operand.hbm [shape: f32[16,32], index: 5, kind: output, shape index: {}]
  %s6 = sld [smem:[#allocation0]]
  $region42: #{tpu_custom_call.1} parent=0
    _
  %s8 = ssub.s32 1, %s6
  %s9 = scalar_select 0, %s8, %s6
  $region1: #{tpu_custom_call.1} parent=0
    #allocation2 [shape = 'u8[8192]{0}', space=vmem, size = 0x2000, scoped, tag = 'input window, operand 0, single buffered']
    #allocation3 [shape = 's32[1]{0}', space=sflag, size = 0x4, scoped, tag = 'scoped memory for tpu_custom_call.1']
    #allocation4 [shape = 's32[1]{0}', space=sflag, size = 0x4, scoped, tag = 'scoped memory for tpu_custom_call.1']
    #allocation5 [shape = 'u8[16384]{0}', space=vmem, size = 0x4000, scoped, tag = 'input window, operand 1, single buffered']
    #allocation6 [shape = 's32[1]{0}', space=sflag, size = 0x4, scoped, tag = 'scoped memory for tpu_custom_call.1']
    #allocation7 [shape = 'u8[16384]{0}', space=vmem, size = 0x4000, scoped, tag = 'input window, operand 3, single buffered']
    #allocation8 [shape = 'u8[8192]{0}', space=vmem, size = 0x2000, scoped, tag = 'output window, operand 0, single buffered']
    %10 = vsyncpa [#allocation3], 0
    %11 = vsyncpa [#allocation6], 0
    %12 = vsyncpa [#allocation4], 0
    // Predicated region
    $region2: #{tpu_custom_call.1} parent=1 // pred_check
      _
    $region3: #{tpu_custom_call.1} parent=1 // pred_check_branch
      %14 = sbr.rel (0) target = $region5
    $region4: #{tpu_custom_call.1} parent=1 // pred_region
      %s16 = ssub.s32 256, 256
      %17 = vsyncadd [#allocation3], %s16
      %s18 = sshll.u32 [#allocation2], 4
      %s19 = int_to_ptr.vmem [resolvable:$true] %s18
      %24 = dma.hbm_to_vmem [thread:$0]  %s0, 256, %s19, [#allocation3], 128, 128, 8
    $region5: #{tpu_custom_call.1} parent=1 // pred_fallthru
      _
    // Predicated region
    $region6: #{tpu_custom_call.1} parent=1 // pred_check
      _
    $region7: #{tpu_custom_call.1} parent=1 // pred_check_branch
      %26 = sbr.rel (0) target = $region9
    $region8: #{tpu_custom_call.1} parent=1 // pred_region
      %s28 = ssub.s32 512, 512
      %29 = vsyncadd [#allocation6], %s28
      %s30 = sshll.u32 [#allocation5], 4
      %s31 = int_to_ptr.vmem [resolvable:$true] %s30
      %36 = dma.hbm_to_vmem [thread:$0]  %s1, 512, %s31, [#allocation6], 128, 128, 8
    $region9: #{tpu_custom_call.1} parent=1 // pred_fallthru
      _
    // Predicated region
    $region10: #{tpu_custom_call.1} parent=1 // pred_check
      _
    $region11: #{tpu_custom_call.1} parent=1 // pred_check_branch
      %38 = sbr.rel (0) target = $region13
    $region12: #{tpu_custom_call.1} parent=1 // pred_region
      _
    $region13: #{tpu_custom_call.1} parent=1 // pred_fallthru
      _
    // Predicated region
    $region14: #{tpu_custom_call.1} parent=1 // pred_check
      _
    $region15: #{tpu_custom_call.1} parent=1 // pred_check_branch
      %40 = sbr.rel (0) target = $region17
    $region16: #{tpu_custom_call.1} parent=1 // pred_region
      %s42 = ssub.s32 512, 512
      %43 = vsyncadd [#allocation6], %s42
      %s44 = sshll.u32 [#allocation7], 4
      %s45 = int_to_ptr.vmem [resolvable:$true] %s44
      %50 = dma.hbm_to_vmem [thread:$0]  %s3, 512, %s45, [#allocation6], 128, 128, 8
    $region17: #{tpu_custom_call.1} parent=1 // pred_fallthru
      _
    // Predicated region
    $region18: #{tpu_custom_call.1} parent=1 // pred_check
      _
    $region19: #{tpu_custom_call.1} parent=1 // pred_check_branch
      %52 = sbr.rel (0) target = $region21
    $region20: #{tpu_custom_call.1} parent=1 // pred_region
      _
    $region21: #{tpu_custom_call.1} parent=1 // pred_fallthru
      _
    // Predicated region
    $region22: #{tpu_custom_call.1} parent=1 // pred_check
      _
    $region23: #{tpu_custom_call.1} parent=1 // pred_check_branch
      %54 = sbr.rel (0) target = $region25
    $region24: #{tpu_custom_call.1} parent=1 // pred_region
      %55 = dma.done [#allocation3], 256
    $region25: #{tpu_custom_call.1} parent=1 // pred_fallthru
      _
    // Predicated region
    $region26: #{tpu_custom_call.1} parent=1 // pred_check
      _
    $region27: #{tpu_custom_call.1} parent=1 // pred_check_branch
      %57 = sbr.rel (0) target = $region29
    $region28: #{tpu_custom_call.1} parent=1 // pred_region
      %58 = dma.done [#allocation6], 512
    $region29: #{tpu_custom_call.1} parent=1 // pred_fallthru
      _
    // Predicated region
    $region30: #{tpu_custom_call.1} parent=1 // pred_check
      _
    $region31: #{tpu_custom_call.1} parent=1 // pred_check_branch
      %60 = sbr.rel (0) target = $region33
    $region32: #{tpu_custom_call.1} parent=1 // pred_region
      %61 = dma.done [#allocation6], 512
    $region33: #{tpu_custom_call.1} parent=1 // pred_fallthru
      _
    %v62 = vld [vmem:[#allocation2] sm:$0xff]
    %v63 = vld [vmem:[#allocation2 + $0x8] sm:$0xff]
    %v64 = vld [vmem:[#allocation5] sm:$0xff]
    %v65 = vld [vmem:[#allocation5 + $0x8] sm:$0xff]
    %v66 = vld [vmem:[#allocation5 + $0x10] sm:$0xff]
    %v67 = vld [vmem:[#allocation5 + $0x18] sm:$0xff]
    %v68 = vld [vmem:[%s2] sm:$0x1]
    %v70 = vlaneseq
    %v71 = vshrl.u32 %v70, 7
    %v72 = vsub.s32 0, %v71
    %v73 = vrot.slane %v68, %v72
    %vm75 = vcmask 261120
    %v77 = vsel %vm75, %v62, 0
    %v80 = vsel %vm75, %v63, 0
    %82 = vmatprep.subr.mxu0 0.0
    %83 = vmatpush1.msra.mxu0 %v64
    %84 = vmatprep.subr.mxu0 0.0
    %85 = vmatpush1.msra.mxu0 %v65
    %86 = vmatprep.subr.mxu0 0.0
    %87 = vmatpush1.msra.mxu0 %v66
    %88 = vmatprep.subr.mxu0 0.0
    %89 = vmatpush1.msra.mxu0 %v67
    %90 = vmatprep.subr.mxu0 0.0
    %91 = vmatpush1.msra.mxu0 0.0
    %92 = vmatprep.subr.mxu0 0.0
    %93 = vmatpush1.msra.mxu0 0.0
    %94 = vmatprep.subr.mxu0 0.0
    %95 = vmatpush1.msra.mxu0 0.0
    %96 = vmatprep.subr.mxu0 0.0
    %97 = vmatpush1.msra.mxu0 0.0
    %98 = vmatprep.subr.mxu0 0.0
    %99 = vmatpush1.msra.mxu0 0.0
    %100 = vmatprep.subr.mxu0 0.0
    %101 = vmatpush1.msra.mxu0 0.0
    %102 = vmatprep.subr.mxu0 0.0
    %103 = vmatpush1.msra.mxu0 0.0
    %104 = vmatprep.subr.mxu0 0.0
    %105 = vmatpush1.msra.mxu0 0.0
    %106 = vmatprep.subr.mxu0 0.0
    %107 = vmatpush1.msra.mxu0 0.0
    %108 = vmatprep.subr.mxu0 0.0
    %109 = vmatpush1.msra.mxu0 0.0
    %110 = vmatprep.subr.mxu0 0.0
    %111 = vmatpush1.msra.mxu0 0.0
    %112 = vmatprep.subr.mxu0 0.0
    %113 = vmatpush1.msra.mxu0 0.0
    %114 = vmatprep.subr.mxu0 0.0
    %115 = vmatpush1.msra.mxu0 0.0
    %116 = vmatprep.subr.mxu0 0.0
    %117 = vmatpush1.msra.mxu0 0.0
    %118 = vmatprep.subr.mxu0 0.0
    %119 = vmatpush1.msra.mxu0 0.0
    %120 = vmatprep.subr.mxu0 0.0
    %121 = vmatpush1.msra.mxu0 0.0
    %122 = vmatprep.subr.mxu0 0.0
    %123 = vmatpush1.msra.mxu0 0.0
    %124 = vmatprep.subr.mxu0 0.0
    %125 = vmatpush1.msra.mxu0 0.0
    %126 = vmatprep.subr.mxu0 0.0
    %127 = vmatpush1.msra.mxu0 0.0
    %128 = vmatprep.subr.mxu0 0.0
    %129 = vmatpush1.msra.mxu0 0.0
    %130 = vmatprep.subr.mxu0 0.0
    %131 = vmatpush1.msra.mxu0 0.0
    %132 = vmatprep.subr.mxu0 0.0
    %133 = vmatpush1.msra.mxu0 0.0
    %134 = vmatprep.subr.mxu0 0.0
    %135 = vmatpush1.msra.mxu0 0.0
    %136 = vmatprep.subr.mxu0 0.0
    %137 = vmatpush1.msra.mxu0 0.0
    %138 = vmatprep.subr.mxu0 0.0
    %139 = vmatpush1.msra.mxu0 0.0
    %140 = vmatprep.subr.mxu0 0.0
    %141 = vmatpush1.msra.mxu0 0.0
    %142 = vmatprep.subr.mxu0 0.0
    %143 = vmatpush1.msra.mxu0 0.0
    %144 = vmatprep.subr.mxu0 0.0
    %145 = vmatpush1.msra.mxu0 0.0
    %146 = vmatprep.mubr.f32.mxu0 0.0
    %147 = vmatmul.mubr.f32.gmra.mrb[0].mxu0 %v77
    %v148 = vpop.f32.mrb[0].mxu0
    %v149 = vadd.f32 %v73, %v148
    %v150 = vpop.f32.mrb[0].mxu0
    %151 = vmatprep.mubr.f32.mxu0 0.0
    %152 = vmatmul.mubr.f32.gmra.mrb[0].mxu0 %v80
    %v153 = vpop.f32.mrb[0].mxu0
    %v154 = vadd.f32 %v73, %v153
    %v155 = vpop.f32.mrb[0].mxu0
    %156 = vdwg.mxu0
    %v157 = vmul.f32 %v149, 0.35355338
    %v158 = vmul.f32 %v154, 0.35355338
    %v159 = vld [vmem:[#allocation7] sm:$0xff]
    %v160 = vld [vmem:[#allocation7 + $0x8] sm:$0xff]
    %v161 = vld [vmem:[#allocation7 + $0x10] sm:$0xff]
    %v162 = vld [vmem:[#allocation7 + $0x18] sm:$0xff]
    %164 = vrot.lane.b32.xlu0 %v149, 96
    %v165 = vpop.permute.xlu0 %164
    %vm166 = vcmask 64512
    %v168 = vsel %vm166, %v157, 0
    %v170 = vsel %vm166, %v165, 0
    %172 = vmatprep.subr.mxu0 0.0
    %173 = vmatpush1.xpose.msra.mxu0 %v170
    %174 = vmatprep.subr.mxu0 0.0
    %175 = vmatpush1.xpose.msra.mxu0 0.0
    %176 = vmatprep.subr.mxu0 0.0
    %177 = vmatpush1.xpose.msra.mxu0 0.0
    %178 = vmatprep.subr.mxu0 0.0
    %179 = vmatpush1.xpose.msra.mxu0 0.0
    %180 = vmatprep.subr.mxu0 0.0
    %181 = vmatpush1.xpose.msra.mxu0 0.0
    %182 = vmatprep.subr.mxu0 0.0
    %183 = vmatpush1.xpose.msra.mxu0 0.0
    %184 = vmatprep.subr.mxu0 0.0
    %185 = vmatpush1.xpose.msra.mxu0 0.0
    %186 = vmatprep.subr.mxu0 0.0
    %187 = vmatpush1.xpose.msra.mxu0 0.0
    %188 = vmatprep.subr.mxu0 0.0
    %189 = vmatpush1.xpose.msra.mxu0 0.0
    %190 = vmatprep.subr.mxu0 0.0
    %191 = vmatpush1.xpose.msra.mxu0 0.0
    %192 = vmatprep.subr.mxu0 0.0
    %193 = vmatpush1.xpose.msra.mxu0 0.0
    %194 = vmatprep.subr.mxu0 0.0
    %195 = vmatpush1.xpose.msra.mxu0 0.0
    %196 = vmatprep.subr.mxu0 0.0
    %197 = vmatpush1.xpose.msra.mxu0 0.0
    %198 = vmatprep.subr.mxu0 0.0
    %199 = vmatpush1.xpose.msra.mxu0 0.0
    %200 = vmatprep.subr.mxu0 0.0
    %201 = vmatpush1.xpose.msra.mxu0 0.0
    %202 = vmatprep.subr.mxu0 0.0
    %203 = vmatpush1.xpose.msra.mxu0 0.0
    %204 = vmatprep.subr.mxu0 0.0
    %205 = vmatpush1.xpose.msra.mxu0 0.0
    %206 = vmatprep.subr.mxu0 0.0
    %207 = vmatpush1.xpose.msra.mxu0 0.0
    %208 = vmatprep.subr.mxu0 0.0
    %209 = vmatpush1.xpose.msra.mxu0 0.0
    %210 = vmatprep.subr.mxu0 0.0
    %211 = vmatpush1.xpose.msra.mxu0 0.0
    %212 = vmatprep.subr.mxu0 0.0
    %213 = vmatpush1.xpose.msra.mxu0 0.0
    %214 = vmatprep.subr.mxu0 0.0
    %215 = vmatpush1.xpose.msra.mxu0 0.0
    %216 = vmatprep.subr.mxu0 0.0
    %217 = vmatpush1.xpose.msra.mxu0 0.0
    %218 = vmatprep.subr.mxu0 0.0
    %219 = vmatpush1.xpose.msra.mxu0 0.0
    %220 = vmatprep.subr.mxu0 0.0
    %221 = vmatpush1.xpose.msra.mxu0 0.0
    %222 = vmatprep.subr.mxu0 0.0
    %223 = vmatpush1.xpose.msra.mxu0 0.0
    %224 = vmatprep.subr.mxu0 0.0
    %225 = vmatpush1.xpose.msra.mxu0 0.0
    %226 = vmatprep.subr.mxu0 0.0
    %227 = vmatpush1.xpose.msra.mxu0 0.0
    %228 = vmatprep.subr.mxu0 0.0
    %229 = vmatpush1.xpose.msra.mxu0 0.0
    %230 = vmatprep.subr.mxu0 0.0
    %231 = vmatpush1.xpose.msra.mxu0 0.0
    %232 = vmatprep.subr.mxu0 0.0
    %233 = vmatpush1.xpose.msra.mxu0 0.0
    %234 = vmatprep.subr.mxu0 0.0
    %235 = vmatpush1.xpose.msra.mxu0 0.0
    %236 = vmatprep.mubr.f32.mxu0 0.0
    %237 = vmatmul.mubr.f32.gmra.mrb[0].mxu0 %v168
    %v238 = vpop.f32.mrb[0].mxu0
    %v239 = vadd.f32 0.0, %v238
    %v240 = vpop.f32.mrb[0].mxu0
    %241 = vdwg.mxu0
    %243 = vrot.lane.b32.xlu0 %v154, 96
    %v244 = vpop.permute.xlu0 %243
    %v246 = vsel %vm166, %v158, 0
    %v248 = vsel %vm166, %v244, 0
    %250 = vmatprep.subr.mxu0 0.0
    %251 = vmatpush1.xpose.msra.mxu0 %v248
    %252 = vmatprep.subr.mxu0 0.0
    %253 = vmatpush1.xpose.msra.mxu0 0.0
    %254 = vmatprep.subr.mxu0 0.0
    %255 = vmatpush1.xpose.msra.mxu0 0.0
    %256 = vmatprep.subr.mxu0 0.0
    %257 = vmatpush1.xpose.msra.mxu0 0.0
    %258 = vmatprep.subr.mxu0 0.0
    %259 = vmatpush1.xpose.msra.mxu0 0.0
    %260 = vmatprep.subr.mxu0 0.0
    %261 = vmatpush1.xpose.msra.mxu0 0.0
    %262 = vmatprep.subr.mxu0 0.0
    %263 = vmatpush1.xpose.msra.mxu0 0.0
    %264 = vmatprep.subr.mxu0 0.0
    %265 = vmatpush1.xpose.msra.mxu0 0.0
    %266 = vmatprep.subr.mxu0 0.0
    %267 = vmatpush1.xpose.msra.mxu0 0.0
    %268 = vmatprep.subr.mxu0 0.0
    %269 = vmatpush1.xpose.msra.mxu0 0.0
    %270 = vmatprep.subr.mxu0 0.0
    %271 = vmatpush1.xpose.msra.mxu0 0.0
    %272 = vmatprep.subr.mxu0 0.0
    %273 = vmatpush1.xpose.msra.mxu0 0.0
    %274 = vmatprep.subr.mxu0 0.0
    %275 = vmatpush1.xpose.msra.mxu0 0.0
    %276 = vmatprep.subr.mxu0 0.0
    %277 = vmatpush1.xpose.msra.mxu0 0.0
    %278 = vmatprep.subr.mxu0 0.0
    %279 = vmatpush1.xpose.msra.mxu0 0.0
    %280 = vmatprep.subr.mxu0 0.0
    %281 = vmatpush1.xpose.msra.mxu0 0.0
    %282 = vmatprep.subr.mxu0 0.0
    %283 = vmatpush1.xpose.msra.mxu0 0.0
    %284 = vmatprep.subr.mxu0 0.0
    %285 = vmatpush1.xpose.msra.mxu0 0.0
    %286 = vmatprep.subr.mxu0 0.0
    %287 = vmatpush1.xpose.msra.mxu0 0.0
    %288 = vmatprep.subr.mxu0 0.0
    %289 = vmatpush1.xpose.msra.mxu0 0.0
    %290 = vmatprep.subr.mxu0 0.0
    %291 = vmatpush1.xpose.msra.mxu0 0.0
    %292 = vmatprep.subr.mxu0 0.0
    %293 = vmatpush1.xpose.msra.mxu0 0.0
    %294 = vmatprep.subr.mxu0 0.0
    %295 = vmatpush1.xpose.msra.mxu0 0.0
    %296 = vmatprep.subr.mxu0 0.0
    %297 = vmatpush1.xpose.msra.mxu0 0.0
    %298 = vmatprep.subr.mxu0 0.0
    %299 = vmatpush1.xpose.msra.mxu0 0.0
    %300 = vmatprep.subr.mxu0 0.0
    %301 = vmatpush1.xpose.msra.mxu0 0.0
    %302 = vmatprep.subr.mxu0 0.0
    %303 = vmatpush1.xpose.msra.mxu0 0.0
    %304 = vmatprep.subr.mxu0 0.0
    %305 = vmatpush1.xpose.msra.mxu0 0.0
    %306 = vmatprep.subr.mxu0 0.0
    %307 = vmatpush1.xpose.msra.mxu0 0.0
    %308 = vmatprep.subr.mxu0 0.0
    %309 = vmatpush1.xpose.msra.mxu0 0.0
    %310 = vmatprep.subr.mxu0 0.0
    %311 = vmatpush1.xpose.msra.mxu0 0.0
    %312 = vmatprep.subr.mxu0 0.0
    %313 = vmatpush1.xpose.msra.mxu0 0.0
    %314 = vmatprep.mubr.f32.mxu0 0.0
    %315 = vmatmul.mubr.f32.gmra.mrb[0].mxu0 %v246
    %v316 = vpop.f32.mrb[0].mxu0
    %v317 = vadd.f32 0.0, %v316
    %v318 = vpop.f32.mrb[0].mxu0
    %319 = vdwg.mxu0
    %v320 = vsel %vm166, %v239, -inf
    %321 = vmax.xlane.f32.xlu0 %v320
    %v322 = vpop.xlane.xlu0 %321
    %v323 = vsel %vm166, %v317, -inf
    %324 = vmax.xlane.f32.xlu0 %v323
    %v325 = vpop.xlane.xlu0 %324
    %v326 = vsub.f32 %v239, %v322
    %v327 = vsub.f32 %v317, %v325
    %v328 = vmul.f32 %v326, 1.442695
    %v329 = vpow.pop %v328
    %v330 = vmul.f32 %v327, 1.442695
    %v331 = vpow.pop %v330
    %v332 = vsel %vm166, %v329, 0.0
    %333 = vadd.xlane.f32.xlu0 %v332
    %v334 = vpop.xlane.xlu0 %333
    %v335 = vsel %vm166, %v331, 0.0
    %336 = vadd.xlane.f32.xlu0 %v335
    %v337 = vpop.xlane.xlu0 %336
    %338 = vrot.lane.b32.xlu0 %v149, 64
    %v339 = vpop.permute.xlu0 %338
    %v342 = vsel %vm166, %v329, 0
    %344 = vmatprep.subr.mxu0 0.0
    %345 = vmatpush1.msra.mxu0 %v339
    %346 = vmatprep.subr.mxu0 0.0
    %347 = vmatpush1.msra.mxu0 0.0
    %348 = vmatprep.subr.mxu0 0.0
    %349 = vmatpush1.msra.mxu0 0.0
    %350 = vmatprep.subr.mxu0 0.0
    %351 = vmatpush1.msra.mxu0 0.0
    %352 = vmatprep.subr.mxu0 0.0
    %353 = vmatpush1.msra.mxu0 0.0
    %354 = vmatprep.subr.mxu0 0.0
    %355 = vmatpush1.msra.mxu0 0.0
    %356 = vmatprep.subr.mxu0 0.0
    %357 = vmatpush1.msra.mxu0 0.0
    %358 = vmatprep.subr.mxu0 0.0
    %359 = vmatpush1.msra.mxu0 0.0
    %360 = vmatprep.subr.mxu0 0.0
    %361 = vmatpush1.msra.mxu0 0.0
    %362 = vmatprep.subr.mxu0 0.0
    %363 = vmatpush1.msra.mxu0 0.0
    %364 = vmatprep.subr.mxu0 0.0
    %365 = vmatpush1.msra.mxu0 0.0
    %366 = vmatprep.subr.mxu0 0.0
    %367 = vmatpush1.msra.mxu0 0.0
    %368 = vmatprep.subr.mxu0 0.0
    %369 = vmatpush1.msra.mxu0 0.0
    %370 = vmatprep.subr.mxu0 0.0
    %371 = vmatpush1.msra.mxu0 0.0
    %372 = vmatprep.subr.mxu0 0.0
    %373 = vmatpush1.msra.mxu0 0.0
    %374 = vmatprep.subr.mxu0 0.0
    %375 = vmatpush1.msra.mxu0 0.0
    %376 = vmatprep.subr.mxu0 0.0
    %377 = vmatpush1.msra.mxu0 0.0
    %378 = vmatprep.subr.mxu0 0.0
    %379 = vmatpush1.msra.mxu0 0.0
    %380 = vmatprep.subr.mxu0 0.0
    %381 = vmatpush1.msra.mxu0 0.0
    %382 = vmatprep.subr.mxu0 0.0
    %383 = vmatpush1.msra.mxu0 0.0
    %384 = vmatprep.subr.mxu0 0.0
    %385 = vmatpush1.msra.mxu0 0.0
    %386 = vmatprep.subr.mxu0 0.0
    %387 = vmatpush1.msra.mxu0 0.0
    %388 = vmatprep.subr.mxu0 0.0
    %389 = vmatpush1.msra.mxu0 0.0
    %390 = vmatprep.subr.mxu0 0.0
    %391 = vmatpush1.msra.mxu0 0.0
    %392 = vmatprep.subr.mxu0 0.0
    %393 = vmatpush1.msra.mxu0 0.0
    %394 = vmatprep.subr.mxu0 0.0
    %395 = vmatpush1.msra.mxu0 0.0
    %396 = vmatprep.subr.mxu0 0.0
    %397 = vmatpush1.msra.mxu0 0.0
    %398 = vmatprep.subr.mxu0 0.0
    %399 = vmatpush1.msra.mxu0 0.0
    %400 = vmatprep.subr.mxu0 0.0
    %401 = vmatpush1.msra.mxu0 0.0
    %402 = vmatprep.subr.mxu0 0.0
    %403 = vmatpush1.msra.mxu0 0.0
    %404 = vmatprep.subr.mxu0 0.0
    %405 = vmatpush1.msra.mxu0 0.0
    %406 = vmatprep.subr.mxu0 0.0
    %407 = vmatpush1.msra.mxu0 0.0
    %408 = vmatprep.mubr.f32.mxu0 0.0
    %409 = vmatmul.mubr.f32.gmra.mrb[0].mxu0 %v342
    %v410 = vpop.f32.mrb[0].mxu0
    %v411 = vadd.f32 0.0, %v410
    %v412 = vpop.f32.mrb[0].mxu0
    %413 = vdwg.mxu0
    %414 = vrot.lane.b32.xlu0 %v154, 64
    %v415 = vpop.permute.xlu0 %414
    %v418 = vsel %vm166, %v331, 0
    %420 = vmatprep.subr.mxu0 0.0
    %421 = vmatpush1.msra.mxu0 %v415
    %422 = vmatprep.subr.mxu0 0.0
    %423 = vmatpush1.msra.mxu0 0.0
    %424 = vmatprep.subr.mxu0 0.0
    %425 = vmatpush1.msra.mxu0 0.0
    %426 = vmatprep.subr.mxu0 0.0
    %427 = vmatpush1.msra.mxu0 0.0
    %428 = vmatprep.subr.mxu0 0.0
    %429 = vmatpush1.msra.mxu0 0.0
    %430 = vmatprep.subr.mxu0 0.0
    %431 = vmatpush1.msra.mxu0 0.0
    %432 = vmatprep.subr.mxu0 0.0
    %433 = vmatpush1.msra.mxu0 0.0
    %434 = vmatprep.subr.mxu0 0.0
    %435 = vmatpush1.msra.mxu0 0.0
    %436 = vmatprep.subr.mxu0 0.0
    %437 = vmatpush1.msra.mxu0 0.0
    %438 = vmatprep.subr.mxu0 0.0
    %439 = vmatpush1.msra.mxu0 0.0
    %440 = vmatprep.subr.mxu0 0.0
    %441 = vmatpush1.msra.mxu0 0.0
    %442 = vmatprep.subr.mxu0 0.0
    %443 = vmatpush1.msra.mxu0 0.0
    %444 = vmatprep.subr.mxu0 0.0
    %445 = vmatpush1.msra.mxu0 0.0
    %446 = vmatprep.subr.mxu0 0.0
    %447 = vmatpush1.msra.mxu0 0.0
    %448 = vmatprep.subr.mxu0 0.0
    %449 = vmatpush1.msra.mxu0 0.0
    %450 = vmatprep.subr.mxu0 0.0
    %451 = vmatpush1.msra.mxu0 0.0
    %452 = vmatprep.subr.mxu0 0.0
    %453 = vmatpush1.msra.mxu0 0.0
    %454 = vmatprep.subr.mxu0 0.0
    %455 = vmatpush1.msra.mxu0 0.0
    %456 = vmatprep.subr.mxu0 0.0
    %457 = vmatpush1.msra.mxu0 0.0
    %458 = vmatprep.subr.mxu0 0.0
    %459 = vmatpush1.msra.mxu0 0.0
    %460 = vmatprep.subr.mxu0 0.0
    %461 = vmatpush1.msra.mxu0 0.0
    %462 = vmatprep.subr.mxu0 0.0
    %463 = vmatpush1.msra.mxu0 0.0
    %464 = vmatprep.subr.mxu0 0.0
    %465 = vmatpush1.msra.mxu0 0.0
    %466 = vmatprep.subr.mxu0 0.0
    %467 = vmatpush1.msra.mxu0 0.0
    %468 = vmatprep.subr.mxu0 0.0
    %469 = vmatpush1.msra.mxu0 0.0
    %470 = vmatprep.subr.mxu0 0.0
    %471 = vmatpush1.msra.mxu0 0.0
    %472 = vmatprep.subr.mxu0 0.0
    %473 = vmatpush1.msra.mxu0 0.0
    %474 = vmatprep.subr.mxu0 0.0
    %475 = vmatpush1.msra.mxu0 0.0
    %476 = vmatprep.subr.mxu0 0.0
    %477 = vmatpush1.msra.mxu0 0.0
    %478 = vmatprep.subr.mxu0 0.0
    %479 = vmatpush1.msra.mxu0 0.0
    %480 = vmatprep.subr.mxu0 0.0
    %481 = vmatpush1.msra.mxu0 0.0
    %482 = vmatprep.subr.mxu0 0.0
    %483 = vmatpush1.msra.mxu0 0.0
    %484 = vmatprep.mubr.f32.mxu0 0.0
    %485 = vmatmul.mubr.f32.gmra.mrb[0].mxu0 %v418
    %v486 = vpop.f32.mrb[0].mxu0
    %v487 = vadd.f32 0.0, %v486
    %v488 = vpop.f32.mrb[0].mxu0
    %489 = vdwg.mxu0
    %v490 = vrcp.pop %v334
    %v491 = vrcp.pop %v337
    %v492 = vmul.f32 %v411, %v490
    %v493 = vmul.f32 %v487, %v491
    %494 = vrot.lane.b32.xlu0 %v157, 120
    %v495 = vpop.permute.xlu0 %494
    %496 = vrot.lane.b32.xlu0 %v149, 88
    %v497 = vpop.permute.xlu0 %496
    %v498 = vsel %vm166, %v495, 0
    %v500 = vsel %vm166, %v497, 0
    %502 = vmatprep.subr.mxu0 0.0
    %503 = vmatpush1.xpose.msra.mxu0 %v500
    %504 = vmatprep.subr.mxu0 0.0
    %505 = vmatpush1.xpose.msra.mxu0 0.0
    %506 = vmatprep.subr.mxu0 0.0
    %507 = vmatpush1.xpose.msra.mxu0 0.0
    %508 = vmatprep.subr.mxu0 0.0
    %509 = vmatpush1.xpose.msra.mxu0 0.0
    %510 = vmatprep.subr.mxu0 0.0
    %511 = vmatpush1.xpose.msra.mxu0 0.0
    %512 = vmatprep.subr.mxu0 0.0
    %513 = vmatpush1.xpose.msra.mxu0 0.0
    %514 = vmatprep.subr.mxu0 0.0
    %515 = vmatpush1.xpose.msra.mxu0 0.0
    %516 = vmatprep.subr.mxu0 0.0
    %517 = vmatpush1.xpose.msra.mxu0 0.0
    %518 = vmatprep.subr.mxu0 0.0
    %519 = vmatpush1.xpose.msra.mxu0 0.0
    %520 = vmatprep.subr.mxu0 0.0
    %521 = vmatpush1.xpose.msra.mxu0 0.0
    %522 = vmatprep.subr.mxu0 0.0
    %523 = vmatpush1.xpose.msra.mxu0 0.0
    %524 = vmatprep.subr.mxu0 0.0
    %525 = vmatpush1.xpose.msra.mxu0 0.0
    %526 = vmatprep.subr.mxu0 0.0
    %527 = vmatpush1.xpose.msra.mxu0 0.0
    %528 = vmatprep.subr.mxu0 0.0
    %529 = vmatpush1.xpose.msra.mxu0 0.0
    %530 = vmatprep.subr.mxu0 0.0
    %531 = vmatpush1.xpose.msra.mxu0 0.0
    %532 = vmatprep.subr.mxu0 0.0
    %533 = vmatpush1.xpose.msra.mxu0 0.0
    %534 = vmatprep.subr.mxu0 0.0
    %535 = vmatpush1.xpose.msra.mxu0 0.0
    %536 = vmatprep.subr.mxu0 0.0
    %537 = vmatpush1.xpose.msra.mxu0 0.0
    %538 = vmatprep.subr.mxu0 0.0
    %539 = vmatpush1.xpose.msra.mxu0 0.0
    %540 = vmatprep.subr.mxu0 0.0
    %541 = vmatpush1.xpose.msra.mxu0 0.0
    %542 = vmatprep.subr.mxu0 0.0
    %543 = vmatpush1.xpose.msra.mxu0 0.0
    %544 = vmatprep.subr.mxu0 0.0
    %545 = vmatpush1.xpose.msra.mxu0 0.0
    %546 = vmatprep.subr.mxu0 0.0
    %547 = vmatpush1.xpose.msra.mxu0 0.0
    %548 = vmatprep.subr.mxu0 0.0
    %549 = vmatpush1.xpose.msra.mxu0 0.0
    %550 = vmatprep.subr.mxu0 0.0
    %551 = vmatpush1.xpose.msra.mxu0 0.0
    %552 = vmatprep.subr.mxu0 0.0
    %553 = vmatpush1.xpose.msra.mxu0 0.0
    %554 = vmatprep.subr.mxu0 0.0
    %555 = vmatpush1.xpose.msra.mxu0 0.0
    %556 = vmatprep.subr.mxu0 0.0
    %557 = vmatpush1.xpose.msra.mxu0 0.0
    %558 = vmatprep.subr.mxu0 0.0
    %559 = vmatpush1.xpose.msra.mxu0 0.0
    %560 = vmatprep.subr.mxu0 0.0
    %561 = vmatpush1.xpose.msra.mxu0 0.0
    %562 = vmatprep.subr.mxu0 0.0
    %563 = vmatpush1.xpose.msra.mxu0 0.0
    %564 = vmatprep.subr.mxu0 0.0
    %565 = vmatpush1.xpose.msra.mxu0 0.0
    %566 = vmatprep.mubr.f32.mxu0 0.0
    %567 = vmatmul.mubr.f32.gmra.mrb[0].mxu0 %v498
    %v568 = vpop.f32.mrb[0].mxu0
    %v569 = vadd.f32 0.0, %v568
    %v570 = vpop.f32.mrb[0].mxu0
    %571 = vdwg.mxu0
    %572 = vrot.lane.b32.xlu0 %v158, 120
    %v573 = vpop.permute.xlu0 %572
    %574 = vrot.lane.b32.xlu0 %v154, 88
    %v575 = vpop.permute.xlu0 %574
    %v576 = vsel %vm166, %v573, 0
    %v578 = vsel %vm166, %v575, 0
    %580 = vmatprep.subr.mxu0 0.0
    %581 = vmatpush1.xpose.msra.mxu0 %v578
    %582 = vmatprep.subr.mxu0 0.0
    %583 = vmatpush1.xpose.msra.mxu0 0.0
    %584 = vmatprep.subr.mxu0 0.0
    %585 = vmatpush1.xpose.msra.mxu0 0.0
    %586 = vmatprep.subr.mxu0 0.0
    %587 = vmatpush1.xpose.msra.mxu0 0.0
    %588 = vmatprep.subr.mxu0 0.0
    %589 = vmatpush1.xpose.msra.mxu0 0.0
    %590 = vmatprep.subr.mxu0 0.0
    %591 = vmatpush1.xpose.msra.mxu0 0.0
    %592 = vmatprep.subr.mxu0 0.0
    %593 = vmatpush1.xpose.msra.mxu0 0.0
    %594 = vmatprep.subr.mxu0 0.0
    %595 = vmatpush1.xpose.msra.mxu0 0.0
    %596 = vmatprep.subr.mxu0 0.0
    %597 = vmatpush1.xpose.msra.mxu0 0.0
    %598 = vmatprep.subr.mxu0 0.0
    %599 = vmatpush1.xpose.msra.mxu0 0.0
    %600 = vmatprep.subr.mxu0 0.0
    %601 = vmatpush1.xpose.msra.mxu0 0.0
    %602 = vmatprep.subr.mxu0 0.0
    %603 = vmatpush1.xpose.msra.mxu0 0.0
    %604 = vmatprep.subr.mxu0 0.0
    %605 = vmatpush1.xpose.msra.mxu0 0.0
    %606 = vmatprep.subr.mxu0 0.0
    %607 = vmatpush1.xpose.msra.mxu0 0.0
    %608 = vmatprep.subr.mxu0 0.0
    %609 = vmatpush1.xpose.msra.mxu0 0.0
    %610 = vmatprep.subr.mxu0 0.0
    %611 = vmatpush1.xpose.msra.mxu0 0.0
    %612 = vmatprep.subr.mxu0 0.0
    %613 = vmatpush1.xpose.msra.mxu0 0.0
    %614 = vmatprep.subr.mxu0 0.0
    %615 = vmatpush1.xpose.msra.mxu0 0.0
    %616 = vmatprep.subr.mxu0 0.0
    %617 = vmatpush1.xpose.msra.mxu0 0.0
    %618 = vmatprep.subr.mxu0 0.0
    %619 = vmatpush1.xpose.msra.mxu0 0.0
    %620 = vmatprep.subr.mxu0 0.0
    %621 = vmatpush1.xpose.msra.mxu0 0.0
    %622 = vmatprep.subr.mxu0 0.0
    %623 = vmatpush1.xpose.msra.mxu0 0.0
    %624 = vmatprep.subr.mxu0 0.0
    %625 = vmatpush1.xpose.msra.mxu0 0.0
    %626 = vmatprep.subr.mxu0 0.0
    %627 = vmatpush1.xpose.msra.mxu0 0.0
    %628 = vmatprep.subr.mxu0 0.0
    %629 = vmatpush1.xpose.msra.mxu0 0.0
    %630 = vmatprep.subr.mxu0 0.0
    %631 = vmatpush1.xpose.msra.mxu0 0.0
    %632 = vmatprep.subr.mxu0 0.0
    %633 = vmatpush1.xpose.msra.mxu0 0.0
    %634 = vmatprep.subr.mxu0 0.0
    %635 = vmatpush1.xpose.msra.mxu0 0.0
    %636 = vmatprep.subr.mxu0 0.0
    %637 = vmatpush1.xpose.msra.mxu0 0.0
    %638 = vmatprep.subr.mxu0 0.0
    %639 = vmatpush1.xpose.msra.mxu0 0.0
    %640 = vmatprep.subr.mxu0 0.0
    %641 = vmatpush1.xpose.msra.mxu0 0.0
    %642 = vmatprep.subr.mxu0 0.0
    %643 = vmatpush1.xpose.msra.mxu0 0.0
    %644 = vmatprep.mubr.f32.mxu0 0.0
    %645 = vmatmul.mubr.f32.gmra.mrb[0].mxu0 %v576
    %v646 = vpop.f32.mrb[0].mxu0
    %v647 = vadd.f32 0.0, %v646
    %v648 = vpop.f32.mrb[0].mxu0
    %649 = vdwg.mxu0
    %v650 = vsel %vm166, %v569, -inf
    %651 = vmax.xlane.f32.xlu0 %v650
    %v652 = vpop.xlane.xlu0 %651
    %v653 = vsel %vm166, %v647, -inf
    %654 = vmax.xlane.f32.xlu0 %v653
    %v655 = vpop.xlane.xlu0 %654
    %v656 = vsub.f32 %v569, %v652
    %v657 = vsub.f32 %v647, %v655
    %v658 = vmul.f32 %v656, 1.442695
    %v659 = vpow.pop %v658
    %v660 = vmul.f32 %v657, 1.442695
    %v661 = vpow.pop %v660
    %v662 = vsel %vm166, %v659, 0.0
    %663 = vadd.xlane.f32.xlu0 %v662
    %v664 = vpop.xlane.xlu0 %663
    %v665 = vsel %vm166, %v661, 0.0
    %666 = vadd.xlane.f32.xlu0 %v665
    %v667 = vpop.xlane.xlu0 %666
    %668 = vrot.lane.b32.xlu0 %v149, 56
    %v669 = vpop.permute.xlu0 %668
    %v672 = vsel %vm166, %v659, 0
    %674 = vmatprep.subr.mxu0 0.0
    %675 = vmatpush1.msra.mxu0 %v669
    %676 = vmatprep.subr.mxu0 0.0
    %677 = vmatpush1.msra.mxu0 0.0
    %678 = vmatprep.subr.mxu0 0.0
    %679 = vmatpush1.msra.mxu0 0.0
    %680 = vmatprep.subr.mxu0 0.0
    %681 = vmatpush1.msra.mxu0 0.0
    %682 = vmatprep.subr.mxu0 0.0
    %683 = vmatpush1.msra.mxu0 0.0
    %684 = vmatprep.subr.mxu0 0.0
    %685 = vmatpush1.msra.mxu0 0.0
    %686 = vmatprep.subr.mxu0 0.0
    %687 = vmatpush1.msra.mxu0 0.0
    %688 = vmatprep.subr.mxu0 0.0
    %689 = vmatpush1.msra.mxu0 0.0
    %690 = vmatprep.subr.mxu0 0.0
    %691 = vmatpush1.msra.mxu0 0.0
    %692 = vmatprep.subr.mxu0 0.0
    %693 = vmatpush1.msra.mxu0 0.0
    %694 = vmatprep.subr.mxu0 0.0
    %695 = vmatpush1.msra.mxu0 0.0
    %696 = vmatprep.subr.mxu0 0.0
    %697 = vmatpush1.msra.mxu0 0.0
    %698 = vmatprep.subr.mxu0 0.0
    %699 = vmatpush1.msra.mxu0 0.0
    %700 = vmatprep.subr.mxu0 0.0
    %701 = vmatpush1.msra.mxu0 0.0
    %702 = vmatprep.subr.mxu0 0.0
    %703 = vmatpush1.msra.mxu0 0.0
    %704 = vmatprep.subr.mxu0 0.0
    %705 = vmatpush1.msra.mxu0 0.0
    %706 = vmatprep.subr.mxu0 0.0
    %707 = vmatpush1.msra.mxu0 0.0
    %708 = vmatprep.subr.mxu0 0.0
    %709 = vmatpush1.msra.mxu0 0.0
    %710 = vmatprep.subr.mxu0 0.0
    %711 = vmatpush1.msra.mxu0 0.0
    %712 = vmatprep.subr.mxu0 0.0
    %713 = vmatpush1.msra.mxu0 0.0
    %714 = vmatprep.subr.mxu0 0.0
    %715 = vmatpush1.msra.mxu0 0.0
    %716 = vmatprep.subr.mxu0 0.0
    %717 = vmatpush1.msra.mxu0 0.0
    %718 = vmatprep.subr.mxu0 0.0
    %719 = vmatpush1.msra.mxu0 0.0
    %720 = vmatprep.subr.mxu0 0.0
    %721 = vmatpush1.msra.mxu0 0.0
    %722 = vmatprep.subr.mxu0 0.0
    %723 = vmatpush1.msra.mxu0 0.0
    %724 = vmatprep.subr.mxu0 0.0
    %725 = vmatpush1.msra.mxu0 0.0
    %726 = vmatprep.subr.mxu0 0.0
    %727 = vmatpush1.msra.mxu0 0.0
    %728 = vmatprep.subr.mxu0 0.0
    %729 = vmatpush1.msra.mxu0 0.0
    %730 = vmatprep.subr.mxu0 0.0
    %731 = vmatpush1.msra.mxu0 0.0
    %732 = vmatprep.subr.mxu0 0.0
    %733 = vmatpush1.msra.mxu0 0.0
    %734 = vmatprep.subr.mxu0 0.0
    %735 = vmatpush1.msra.mxu0 0.0
    %736 = vmatprep.subr.mxu0 0.0
    %737 = vmatpush1.msra.mxu0 0.0
    %738 = vmatprep.mubr.f32.mxu0 0.0
    %739 = vmatmul.mubr.f32.gmra.mrb[0].mxu0 %v672
    %v740 = vpop.f32.mrb[0].mxu0
    %v741 = vadd.f32 0.0, %v740
    %v742 = vpop.f32.mrb[0].mxu0
    %743 = vdwg.mxu0
    %744 = vrot.lane.b32.xlu0 %v154, 56
    %v745 = vpop.permute.xlu0 %744
    %v748 = vsel %vm166, %v661, 0
    %750 = vmatprep.subr.mxu0 0.0
    %751 = vmatpush1.msra.mxu0 %v745
    %752 = vmatprep.subr.mxu0 0.0
    %753 = vmatpush1.msra.mxu0 0.0
    %754 = vmatprep.subr.mxu0 0.0
    %755 = vmatpush1.msra.mxu0 0.0
    %756 = vmatprep.subr.mxu0 0.0
    %757 = vmatpush1.msra.mxu0 0.0
    %758 = vmatprep.subr.mxu0 0.0
    %759 = vmatpush1.msra.mxu0 0.0
    %760 = vmatprep.subr.mxu0 0.0
    %761 = vmatpush1.msra.mxu0 0.0
    %762 = vmatprep.subr.mxu0 0.0
    %763 = vmatpush1.msra.mxu0 0.0
    %764 = vmatprep.subr.mxu0 0.0
    %765 = vmatpush1.msra.mxu0 0.0
    %766 = vmatprep.subr.mxu0 0.0
    %767 = vmatpush1.msra.mxu0 0.0
    %768 = vmatprep.subr.mxu0 0.0
    %769 = vmatpush1.msra.mxu0 0.0
    %770 = vmatprep.subr.mxu0 0.0
    %771 = vmatpush1.msra.mxu0 0.0
    %772 = vmatprep.subr.mxu0 0.0
    %773 = vmatpush1.msra.mxu0 0.0
    %774 = vmatprep.subr.mxu0 0.0
    %775 = vmatpush1.msra.mxu0 0.0
    %776 = vmatprep.subr.mxu0 0.0
    %777 = vmatpush1.msra.mxu0 0.0
    %778 = vmatprep.subr.mxu0 0.0
    %779 = vmatpush1.msra.mxu0 0.0
    %780 = vmatprep.subr.mxu0 0.0
    %781 = vmatpush1.msra.mxu0 0.0
    %782 = vmatprep.subr.mxu0 0.0
    %783 = vmatpush1.msra.mxu0 0.0
    %784 = vmatprep.subr.mxu0 0.0
    %785 = vmatpush1.msra.mxu0 0.0
    %786 = vmatprep.subr.mxu0 0.0
    %787 = vmatpush1.msra.mxu0 0.0
    %788 = vmatprep.subr.mxu0 0.0
    %789 = vmatpush1.msra.mxu0 0.0
    %790 = vmatprep.subr.mxu0 0.0
    %791 = vmatpush1.msra.mxu0 0.0
    %792 = vmatprep.subr.mxu0 0.0
    %793 = vmatpush1.msra.mxu0 0.0
    %794 = vmatprep.subr.mxu0 0.0
    %795 = vmatpush1.msra.mxu0 0.0
    %796 = vmatprep.subr.mxu0 0.0
    %797 = vmatpush1.msra.mxu0 0.0
    %798 = vmatprep.subr.mxu0 0.0
    %799 = vmatpush1.msra.mxu0 0.0
    %800 = vmatprep.subr.mxu0 0.0
    %801 = vmatpush1.msra.mxu0 0.0
    %802 = vmatprep.subr.mxu0 0.0
    %803 = vmatpush1.msra.mxu0 0.0
    %804 = vmatprep.subr.mxu0 0.0
    %805 = vmatpush1.msra.mxu0 0.0
    %806 = vmatprep.subr.mxu0 0.0
    %807 = vmatpush1.msra.mxu0 0.0
    %808 = vmatprep.subr.mxu0 0.0
    %809 = vmatpush1.msra.mxu0 0.0
    %810 = vmatprep.subr.mxu0 0.0
    %811 = vmatpush1.msra.mxu0 0.0
    %812 = vmatprep.subr.mxu0 0.0
    %813 = vmatpush1.msra.mxu0 0.0
    %814 = vmatprep.mubr.f32.mxu0 0.0
    %815 = vmatmul.mubr.f32.gmra.mrb[0].mxu0 %v748
    %v816 = vpop.f32.mrb[0].mxu0
    %v817 = vadd.f32 0.0, %v816
    %v818 = vpop.f32.mrb[0].mxu0
    %819 = vdwg.mxu0
    %v820 = vrcp.pop %v664
    %v821 = vrcp.pop %v667
    %v822 = vmul.f32 %v741, %v820
    %v823 = vmul.f32 %v817, %v821
    %v825 = vsel %vm166, %v822, 0
    %v828 = vsel %vm166, %v823, 0
    %830 = vmatprep.subr.mxu0 0.0
    %831 = vmatpush1.msra.mxu0 %v160
    %832 = vmatprep.subr.mxu0 0.0
    %833 = vmatpush1.msra.mxu0 0.0
    %834 = vmatprep.subr.mxu0 0.0
    %835 = vmatpush1.msra.mxu0 0.0
    %836 = vmatprep.subr.mxu0 0.0
    %837 = vmatpush1.msra.mxu0 0.0
    %838 = vmatprep.subr.mxu0 0.0
    %839 = vmatpush1.msra.mxu0 0.0
    %840 = vmatprep.subr.mxu0 0.0
    %841 = vmatpush1.msra.mxu0 0.0
    %842 = vmatprep.subr.mxu0 0.0
    %843 = vmatpush1.msra.mxu0 0.0
    %844 = vmatprep.subr.mxu0 0.0
    %845 = vmatpush1.msra.mxu0 0.0
    %846 = vmatprep.subr.mxu0 0.0
    %847 = vmatpush1.msra.mxu0 0.0
    %848 = vmatprep.subr.mxu0 0.0
    %849 = vmatpush1.msra.mxu0 0.0
    %850 = vmatprep.subr.mxu0 0.0
    %851 = vmatpush1.msra.mxu0 0.0
    %852 = vmatprep.subr.mxu0 0.0
    %853 = vmatpush1.msra.mxu0 0.0
    %854 = vmatprep.subr.mxu0 0.0
    %855 = vmatpush1.msra.mxu0 0.0
    %856 = vmatprep.subr.mxu0 0.0
    %857 = vmatpush1.msra.mxu0 0.0
    %858 = vmatprep.subr.mxu0 0.0
    %859 = vmatpush1.msra.mxu0 0.0
    %860 = vmatprep.subr.mxu0 0.0
    %861 = vmatpush1.msra.mxu0 0.0
    %862 = vmatprep.subr.mxu0 0.0
    %863 = vmatpush1.msra.mxu0 0.0
    %864 = vmatprep.subr.mxu0 0.0
    %865 = vmatpush1.msra.mxu0 0.0
    %866 = vmatprep.subr.mxu0 0.0
    %867 = vmatpush1.msra.mxu0 0.0
    %868 = vmatprep.subr.mxu0 0.0
    %869 = vmatpush1.msra.mxu0 0.0
    %870 = vmatprep.subr.mxu0 0.0
    %871 = vmatpush1.msra.mxu0 0.0
    %872 = vmatprep.subr.mxu0 0.0
    %873 = vmatpush1.msra.mxu0 0.0
    %874 = vmatprep.subr.mxu0 0.0
    %875 = vmatpush1.msra.mxu0 0.0
    %876 = vmatprep.subr.mxu0 0.0
    %877 = vmatpush1.msra.mxu0 0.0
    %878 = vmatprep.subr.mxu0 0.0
    %879 = vmatpush1.msra.mxu0 0.0
    %880 = vmatprep.subr.mxu0 0.0
    %881 = vmatpush1.msra.mxu0 0.0
    %882 = vmatprep.subr.mxu0 0.0
    %883 = vmatpush1.msra.mxu0 0.0
    %884 = vmatprep.subr.mxu0 0.0
    %885 = vmatpush1.msra.mxu0 0.0
    %886 = vmatprep.subr.mxu0 0.0
    %887 = vmatpush1.msra.mxu0 0.0
    %888 = vmatprep.subr.mxu0 0.0
    %889 = vmatpush1.msra.mxu0 0.0
    %890 = vmatprep.subr.mxu0 0.0
    %891 = vmatpush1.msra.mxu0 0.0
    %892 = vmatprep.subr.mxu0 0.0
    %893 = vmatpush1.msra.mxu0 0.0
    %894 = vmatprep.mubr.f32.mxu0 0.0
    %895 = vmatmul.mubr.f32.gmra.mrb[0].mxu0 %v825
    %v896 = vpop.f32.mrb[0].mxu0
    %v897 = vadd.f32 0.0, %v896
    %v898 = vpop.f32.mrb[0].mxu0
    %899 = vmatprep.mubr.f32.mxu0 0.0
    %900 = vmatmul.mubr.f32.gmra.mrb[0].mxu0 %v828
    %v901 = vpop.f32.mrb[0].mxu0
    %v902 = vadd.f32 0.0, %v901
    %v903 = vpop.f32.mrb[0].mxu0
    %904 = vdwg.mxu0
    %v906 = vsel %vm166, %v492, 0
    %v909 = vsel %vm166, %v493, 0
    %911 = vmatprep.subr.mxu0 0.0
    %912 = vmatpush1.msra.mxu0 %v159
    %913 = vmatprep.subr.mxu0 0.0
    %914 = vmatpush1.msra.mxu0 0.0
    %915 = vmatprep.subr.mxu0 0.0
    %916 = vmatpush1.msra.mxu0 0.0
    %917 = vmatprep.subr.mxu0 0.0
    %918 = vmatpush1.msra.mxu0 0.0
    %919 = vmatprep.subr.mxu0 0.0
    %920 = vmatpush1.msra.mxu0 0.0
    %921 = vmatprep.subr.mxu0 0.0
    %922 = vmatpush1.msra.mxu0 0.0
    %923 = vmatprep.subr.mxu0 0.0
    %924 = vmatpush1.msra.mxu0 0.0
    %925 = vmatprep.subr.mxu0 0.0
    %926 = vmatpush1.msra.mxu0 0.0
    %927 = vmatprep.subr.mxu0 0.0
    %928 = vmatpush1.msra.mxu0 0.0
    %929 = vmatprep.subr.mxu0 0.0
    %930 = vmatpush1.msra.mxu0 0.0
    %931 = vmatprep.subr.mxu0 0.0
    %932 = vmatpush1.msra.mxu0 0.0
    %933 = vmatprep.subr.mxu0 0.0
    %934 = vmatpush1.msra.mxu0 0.0
    %935 = vmatprep.subr.mxu0 0.0
    %936 = vmatpush1.msra.mxu0 0.0
    %937 = vmatprep.subr.mxu0 0.0
    %938 = vmatpush1.msra.mxu0 0.0
    %939 = vmatprep.subr.mxu0 0.0
    %940 = vmatpush1.msra.mxu0 0.0
    %941 = vmatprep.subr.mxu0 0.0
    %942 = vmatpush1.msra.mxu0 0.0
    %943 = vmatprep.subr.mxu0 0.0
    %944 = vmatpush1.msra.mxu0 0.0
    %945 = vmatprep.subr.mxu0 0.0
    %946 = vmatpush1.msra.mxu0 0.0
    %947 = vmatprep.subr.mxu0 0.0
    %948 = vmatpush1.msra.mxu0 0.0
    %949 = vmatprep.subr.mxu0 0.0
    %950 = vmatpush1.msra.mxu0 0.0
    %951 = vmatprep.subr.mxu0 0.0
    %952 = vmatpush1.msra.mxu0 0.0
    %953 = vmatprep.subr.mxu0 0.0
    %954 = vmatpush1.msra.mxu0 0.0
    %955 = vmatprep.subr.mxu0 0.0
    %956 = vmatpush1.msra.mxu0 0.0
    %957 = vmatprep.subr.mxu0 0.0
    %958 = vmatpush1.msra.mxu0 0.0
    %959 = vmatprep.subr.mxu0 0.0
    %960 = vmatpush1.msra.mxu0 0.0
    %961 = vmatprep.subr.mxu0 0.0
    %962 = vmatpush1.msra.mxu0 0.0
    %963 = vmatprep.subr.mxu0 0.0
    %964 = vmatpush1.msra.mxu0 0.0
    %965 = vmatprep.subr.mxu0 0.0
    %966 = vmatpush1.msra.mxu0 0.0
    %967 = vmatprep.subr.mxu0 0.0
    %968 = vmatpush1.msra.mxu0 0.0
    %969 = vmatprep.subr.mxu0 0.0
    %970 = vmatpush1.msra.mxu0 0.0
    %971 = vmatprep.subr.mxu0 0.0
    %972 = vmatpush1.msra.mxu0 0.0
    %973 = vmatprep.subr.mxu0 0.0
    %974 = vmatpush1.msra.mxu0 0.0
    %975 = vmatprep.mubr.f32.mxu0 0.0
    %976 = vmatmul.mubr.f32.gmra.mrb[0].mxu0 %v906
    %v977 = vpop.f32.mrb[0].mxu0
    %v978 = vadd.f32 %v897, %v977
    %v979 = vpop.f32.mrb[0].mxu0
    %980 = vmatprep.mubr.f32.mxu0 0.0
    %981 = vmatmul.mubr.f32.gmra.mrb[0].mxu0 %v909
    %v982 = vpop.f32.mrb[0].mxu0
    %v983 = vadd.f32 %v902, %v982
    %v984 = vpop.f32.mrb[0].mxu0
    %985 = vdwg.mxu0
    %986 = vrot.lane.b32.xlu0 %v157, 112
    %v987 = vpop.permute.xlu0 %986
    %988 = vrot.lane.b32.xlu0 %v149, 80
    %v989 = vpop.permute.xlu0 %988
    %v990 = vsel %vm166, %v987, 0
    %v992 = vsel %vm166, %v989, 0
    %994 = vmatprep.subr.mxu0 0.0
    %995 = vmatpush1.xpose.msra.mxu0 %v992
    %996 = vmatprep.subr.mxu0 0.0
    %997 = vmatpush1.xpose.msra.mxu0 0.0
    %998 = vmatprep.subr.mxu0 0.0
    %999 = vmatpush1.xpose.msra.mxu0 0.0
    %1000 = vmatprep.subr.mxu0 0.0
    %1001 = vmatpush1.xpose.msra.mxu0 0.0
    %1002 = vmatprep.subr.mxu0 0.0
    %1003 = vmatpush1.xpose.msra.mxu0 0.0
    %1004 = vmatprep.subr.mxu0 0.0
    %1005 = vmatpush1.xpose.msra.mxu0 0.0
    %1006 = vmatprep.subr.mxu0 0.0
    %1007 = vmatpush1.xpose.msra.mxu0 0.0
    %1008 = vmatprep.subr.mxu0 0.0
    %1009 = vmatpush1.xpose.msra.mxu0 0.0
    %1010 = vmatprep.subr.mxu0 0.0
    %1011 = vmatpush1.xpose.msra.mxu0 0.0
    %1012 = vmatprep.subr.mxu0 0.0
    %1013 = vmatpush1.xpose.msra.mxu0 0.0
    %1014 = vmatprep.subr.mxu0 0.0
    %1015 = vmatpush1.xpose.msra.mxu0 0.0
    %1016 = vmatprep.subr.mxu0 0.0
    %1017 = vmatpush1.xpose.msra.mxu0 0.0
    %1018 = vmatprep.subr.mxu0 0.0
    %1019 = vmatpush1.xpose.msra.mxu0 0.0
    %1020 = vmatprep.subr.mxu0 0.0
    %1021 = vmatpush1.xpose.msra.mxu0 0.0
    %1022 = vmatprep.subr.mxu0 0.0
    %1023 = vmatpush1.xpose.msra.mxu0 0.0
    %1024 = vmatprep.subr.mxu0 0.0
    %1025 = vmatpush1.xpose.msra.mxu0 0.0
    %1026 = vmatprep.subr.mxu0 0.0
    %1027 = vmatpush1.xpose.msra.mxu0 0.0
    %1028 = vmatprep.subr.mxu0 0.0
    %1029 = vmatpush1.xpose.msra.mxu0 0.0
    %1030 = vmatprep.subr.mxu0 0.0
    %1031 = vmatpush1.xpose.msra.mxu0 0.0
    %1032 = vmatprep.subr.mxu0 0.0
    %1033 = vmatpush1.xpose.msra.mxu0 0.0
    %1034 = vmatprep.subr.mxu0 0.0
    %1035 = vmatpush1.xpose.msra.mxu0 0.0
    %1036 = vmatprep.subr.mxu0 0.0
    %1037 = vmatpush1.xpose.msra.mxu0 0.0
    %1038 = vmatprep.subr.mxu0 0.0
    %1039 = vmatpush1.xpose.msra.mxu0 0.0
    %1040 = vmatprep.subr.mxu0 0.0
    %1041 = vmatpush1.xpose.msra.mxu0 0.0
    %1042 = vmatprep.subr.mxu0 0.0
    %1043 = vmatpush1.xpose.msra.mxu0 0.0
    %1044 = vmatprep.subr.mxu0 0.0
    %1045 = vmatpush1.xpose.msra.mxu0 0.0
    %1046 = vmatprep.subr.mxu0 0.0
    %1047 = vmatpush1.xpose.msra.mxu0 0.0
    %1048 = vmatprep.subr.mxu0 0.0
    %1049 = vmatpush1.xpose.msra.mxu0 0.0
    %1050 = vmatprep.subr.mxu0 0.0
    %1051 = vmatpush1.xpose.msra.mxu0 0.0
    %1052 = vmatprep.subr.mxu0 0.0
    %1053 = vmatpush1.xpose.msra.mxu0 0.0
    %1054 = vmatprep.subr.mxu0 0.0
    %1055 = vmatpush1.xpose.msra.mxu0 0.0
    %1056 = vmatprep.subr.mxu0 0.0
    %1057 = vmatpush1.xpose.msra.mxu0 0.0
    %1058 = vmatprep.mubr.f32.mxu0 0.0
    %1059 = vmatmul.mubr.f32.gmra.mrb[0].mxu0 %v990
    %v1060 = vpop.f32.mrb[0].mxu0
    %v1061 = vadd.f32 0.0, %v1060
    %v1062 = vpop.f32.mrb[0].mxu0
    %1063 = vdwg.mxu0
    %1064 = vrot.lane.b32.xlu0 %v158, 112
    %v1065 = vpop.permute.xlu0 %1064
    %1066 = vrot.lane.b32.xlu0 %v154, 80
    %v1067 = vpop.permute.xlu0 %1066
    %v1068 = vsel %vm166, %v1065, 0
    %v1070 = vsel %vm166, %v1067, 0
    %1072 = vmatprep.subr.mxu0 0.0
    %1073 = vmatpush1.xpose.msra.mxu0 %v1070
    %1074 = vmatprep.subr.mxu0 0.0
    %1075 = vmatpush1.xpose.msra.mxu0 0.0
    %1076 = vmatprep.subr.mxu0 0.0
    %1077 = vmatpush1.xpose.msra.mxu0 0.0
    %1078 = vmatprep.subr.mxu0 0.0
    %1079 = vmatpush1.xpose.msra.mxu0 0.0
    %1080 = vmatprep.subr.mxu0 0.0
    %1081 = vmatpush1.xpose.msra.mxu0 0.0
    %1082 = vmatprep.subr.mxu0 0.0
    %1083 = vmatpush1.xpose.msra.mxu0 0.0
    %1084 = vmatprep.subr.mxu0 0.0
    %1085 = vmatpush1.xpose.msra.mxu0 0.0
    %1086 = vmatprep.subr.mxu0 0.0
    %1087 = vmatpush1.xpose.msra.mxu0 0.0
    %1088 = vmatprep.subr.mxu0 0.0
    %1089 = vmatpush1.xpose.msra.mxu0 0.0
    %1090 = vmatprep.subr.mxu0 0.0
    %1091 = vmatpush1.xpose.msra.mxu0 0.0
    %1092 = vmatprep.subr.mxu0 0.0
    %1093 = vmatpush1.xpose.msra.mxu0 0.0
    %1094 = vmatprep.subr.mxu0 0.0
    %1095 = vmatpush1.xpose.msra.mxu0 0.0
    %1096 = vmatprep.subr.mxu0 0.0
    %1097 = vmatpush1.xpose.msra.mxu0 0.0
    %1098 = vmatprep.subr.mxu0 0.0
    %1099 = vmatpush1.xpose.msra.mxu0 0.0
    %1100 = vmatprep.subr.mxu0 0.0
    %1101 = vmatpush1.xpose.msra.mxu0 0.0
    %1102 = vmatprep.subr.mxu0 0.0
    %1103 = vmatpush1.xpose.msra.mxu0 0.0
    %1104 = vmatprep.subr.mxu0 0.0
    %1105 = vmatpush1.xpose.msra.mxu0 0.0
    %1106 = vmatprep.subr.mxu0 0.0
    %1107 = vmatpush1.xpose.msra.mxu0 0.0
    %1108 = vmatprep.subr.mxu0 0.0
    %1109 = vmatpush1.xpose.msra.mxu0 0.0
    %1110 = vmatprep.subr.mxu0 0.0
    %1111 = vmatpush1.xpose.msra.mxu0 0.0
    %1112 = vmatprep.subr.mxu0 0.0
    %1113 = vmatpush1.xpose.msra.mxu0 0.0
    %1114 = vmatprep.subr.mxu0 0.0
    %1115 = vmatpush1.xpose.msra.mxu0 0.0
    %1116 = vmatprep.subr.mxu0 0.0
    %1117 = vmatpush1.xpose.msra.mxu0 0.0
    %1118 = vmatprep.subr.mxu0 0.0
    %1119 = vmatpush1.xpose.msra.mxu0 0.0
    %1120 = vmatprep.subr.mxu0 0.0
    %1121 = vmatpush1.xpose.msra.mxu0 0.0
    %1122 = vmatprep.subr.mxu0 0.0
    %1123 = vmatpush1.xpose.msra.mxu0 0.0
    %1124 = vmatprep.subr.mxu0 0.0
    %1125 = vmatpush1.xpose.msra.mxu0 0.0
    %1126 = vmatprep.subr.mxu0 0.0
    %1127 = vmatpush1.xpose.msra.mxu0 0.0
    %1128 = vmatprep.subr.mxu0 0.0
    %1129 = vmatpush1.xpose.msra.mxu0 0.0
    %1130 = vmatprep.subr.mxu0 0.0
    %1131 = vmatpush1.xpose.msra.mxu0 0.0
    %1132 = vmatprep.subr.mxu0 0.0
    %1133 = vmatpush1.xpose.msra.mxu0 0.0
    %1134 = vmatprep.subr.mxu0 0.0
    %1135 = vmatpush1.xpose.msra.mxu0 0.0
    %1136 = vmatprep.mubr.f32.mxu0 0.0
    %1137 = vmatmul.mubr.f32.gmra.mrb[0].mxu0 %v1068
    %v1138 = vpop.f32.mrb[0].mxu0
    %v1139 = vadd.f32 0.0, %v1138
    %v1140 = vpop.f32.mrb[0].mxu0
    %1141 = vdwg.mxu0
    %v1142 = vsel %vm166, %v1061, -inf
    %1143 = vmax.xlane.f32.xlu0 %v1142
    %v1144 = vpop.xlane.xlu0 %1143
    %v1145 = vsel %vm166, %v1139, -inf
    %1146 = vmax.xlane.f32.xlu0 %v1145
    %v1147 = vpop.xlane.xlu0 %1146
    %v1148 = vsub.f32 %v1061, %v1144
    %v1149 = vsub.f32 %v1139, %v1147
    %v1150 = vmul.f32 %v1148, 1.442695
    %v1151 = vpow.pop %v1150
    %v1152 = vmul.f32 %v1149, 1.442695
    %v1153 = vpow.pop %v1152
    %v1154 = vsel %vm166, %v1151, 0.0
    %1155 = vadd.xlane.f32.xlu0 %v1154
    %v1156 = vpop.xlane.xlu0 %1155
    %v1157 = vsel %vm166, %v1153, 0.0
    %1158 = vadd.xlane.f32.xlu0 %v1157
    %v1159 = vpop.xlane.xlu0 %1158
    %1160 = vrot.lane.b32.xlu0 %v149, 48
    %v1161 = vpop.permute.xlu0 %1160
    %v1164 = vsel %vm166, %v1151, 0
    %1166 = vmatprep.subr.mxu0 0.0
    %1167 = vmatpush1.msra.mxu0 %v1161
    %1168 = vmatprep.subr.mxu0 0.0
    %1169 = vmatpush1.msra.mxu0 0.0
    %1170 = vmatprep.subr.mxu0 0.0
    %1171 = vmatpush1.msra.mxu0 0.0
    %1172 = vmatprep.subr.mxu0 0.0
    %1173 = vmatpush1.msra.mxu0 0.0
    %1174 = vmatprep.subr.mxu0 0.0
    %1175 = vmatpush1.msra.mxu0 0.0
    %1176 = vmatprep.subr.mxu0 0.0
    %1177 = vmatpush1.msra.mxu0 0.0
    %1178 = vmatprep.subr.mxu0 0.0
    %1179 = vmatpush1.msra.mxu0 0.0
    %1180 = vmatprep.subr.mxu0 0.0
    %1181 = vmatpush1.msra.mxu0 0.0
    %1182 = vmatprep.subr.mxu0 0.0
    %1183 = vmatpush1.msra.mxu0 0.0
    %1184 = vmatprep.subr.mxu0 0.0
    %1185 = vmatpush1.msra.mxu0 0.0
    %1186 = vmatprep.subr.mxu0 0.0
    %1187 = vmatpush1.msra.mxu0 0.0
    %1188 = vmatprep.subr.mxu0 0.0
    %1189 = vmatpush1.msra.mxu0 0.0
    %1190 = vmatprep.subr.mxu0 0.0
    %1191 = vmatpush1.msra.mxu0 0.0
    %1192 = vmatprep.subr.mxu0 0.0
    %1193 = vmatpush1.msra.mxu0 0.0
    %1194 = vmatprep.subr.mxu0 0.0
    %1195 = vmatpush1.msra.mxu0 0.0
    %1196 = vmatprep.subr.mxu0 0.0
    %1197 = vmatpush1.msra.mxu0 0.0
    %1198 = vmatprep.subr.mxu0 0.0
    %1199 = vmatpush1.msra.mxu0 0.0
    %1200 = vmatprep.subr.mxu0 0.0
    %1201 = vmatpush1.msra.mxu0 0.0
    %1202 = vmatprep.subr.mxu0 0.0
    %1203 = vmatpush1.msra.mxu0 0.0
    %1204 = vmatprep.subr.mxu0 0.0
    %1205 = vmatpush1.msra.mxu0 0.0
    %1206 = vmatprep.subr.mxu0 0.0
    %1207 = vmatpush1.msra.mxu0 0.0
    %1208 = vmatprep.subr.mxu0 0.0
    %1209 = vmatpush1.msra.mxu0 0.0
    %1210 = vmatprep.subr.mxu0 0.0
    %1211 = vmatpush1.msra.mxu0 0.0
    %1212 = vmatprep.subr.mxu0 0.0
    %1213 = vmatpush1.msra.mxu0 0.0
    %1214 = vmatprep.subr.mxu0 0.0
    %1215 = vmatpush1.msra.mxu0 0.0
    %1216 = vmatprep.subr.mxu0 0.0
    %1217 = vmatpush1.msra.mxu0 0.0
    %1218 = vmatprep.subr.mxu0 0.0
    %1219 = vmatpush1.msra.mxu0 0.0
    %1220 = vmatprep.subr.mxu0 0.0
    %1221 = vmatpush1.msra.mxu0 0.0
    %1222 = vmatprep.subr.mxu0 0.0
    %1223 = vmatpush1.msra.mxu0 0.0
    %1224 = vmatprep.subr.mxu0 0.0
    %1225 = vmatpush1.msra.mxu0 0.0
    %1226 = vmatprep.subr.mxu0 0.0
    %1227 = vmatpush1.msra.mxu0 0.0
    %1228 = vmatprep.subr.mxu0 0.0
    %1229 = vmatpush1.msra.mxu0 0.0
    %1230 = vmatprep.mubr.f32.mxu0 0.0
    %1231 = vmatmul.mubr.f32.gmra.mrb[0].mxu0 %v1164
    %v1232 = vpop.f32.mrb[0].mxu0
    %v1233 = vadd.f32 0.0, %v1232
    %v1234 = vpop.f32.mrb[0].mxu0
    %1235 = vdwg.mxu0
    %1236 = vrot.lane.b32.xlu0 %v154, 48
    %v1237 = vpop.permute.xlu0 %1236
    %v1240 = vsel %vm166, %v1153, 0
    %1242 = vmatprep.subr.mxu0 0.0
    %1243 = vmatpush1.msra.mxu0 %v1237
    %1244 = vmatprep.subr.mxu0 0.0
    %1245 = vmatpush1.msra.mxu0 0.0
    %1246 = vmatprep.subr.mxu0 0.0
    %1247 = vmatpush1.msra.mxu0 0.0
    %1248 = vmatprep.subr.mxu0 0.0
    %1249 = vmatpush1.msra.mxu0 0.0
    %1250 = vmatprep.subr.mxu0 0.0
    %1251 = vmatpush1.msra.mxu0 0.0
    %1252 = vmatprep.subr.mxu0 0.0
    %1253 = vmatpush1.msra.mxu0 0.0
    %1254 = vmatprep.subr.mxu0 0.0
    %1255 = vmatpush1.msra.mxu0 0.0
    %1256 = vmatprep.subr.mxu0 0.0
    %1257 = vmatpush1.msra.mxu0 0.0
    %1258 = vmatprep.subr.mxu0 0.0
    %1259 = vmatpush1.msra.mxu0 0.0
    %1260 = vmatprep.subr.mxu0 0.0
    %1261 = vmatpush1.msra.mxu0 0.0
    %1262 = vmatprep.subr.mxu0 0.0
    %1263 = vmatpush1.msra.mxu0 0.0
    %1264 = vmatprep.subr.mxu0 0.0
    %1265 = vmatpush1.msra.mxu0 0.0
    %1266 = vmatprep.subr.mxu0 0.0
    %1267 = vmatpush1.msra.mxu0 0.0
    %1268 = vmatprep.subr.mxu0 0.0
    %1269 = vmatpush1.msra.mxu0 0.0
    %1270 = vmatprep.subr.mxu0 0.0
    %1271 = vmatpush1.msra.mxu0 0.0
    %1272 = vmatprep.subr.mxu0 0.0
    %1273 = vmatpush1.msra.mxu0 0.0
    %1274 = vmatprep.subr.mxu0 0.0
    %1275 = vmatpush1.msra.mxu0 0.0
    %1276 = vmatprep.subr.mxu0 0.0
    %1277 = vmatpush1.msra.mxu0 0.0
    %1278 = vmatprep.subr.mxu0 0.0
    %1279 = vmatpush1.msra.mxu0 0.0
    %1280 = vmatprep.subr.mxu0 0.0
    %1281 = vmatpush1.msra.mxu0 0.0
    %1282 = vmatprep.subr.mxu0 0.0
    %1283 = vmatpush1.msra.mxu0 0.0
    %1284 = vmatprep.subr.mxu0 0.0
    %1285 = vmatpush1.msra.mxu0 0.0
    %1286 = vmatprep.subr.mxu0 0.0
    %1287 = vmatpush1.msra.mxu0 0.0
    %1288 = vmatprep.subr.mxu0 0.0
    %1289 = vmatpush1.msra.mxu0 0.0
    %1290 = vmatprep.subr.mxu0 0.0
    %1291 = vmatpush1.msra.mxu0 0.0
    %1292 = vmatprep.subr.mxu0 0.0
    %1293 = vmatpush1.msra.mxu0 0.0
    %1294 = vmatprep.subr.mxu0 0.0
    %1295 = vmatpush1.msra.mxu0 0.0
    %1296 = vmatprep.subr.mxu0 0.0
    %1297 = vmatpush1.msra.mxu0 0.0
    %1298 = vmatprep.subr.mxu0 0.0
    %1299 = vmatpush1.msra.mxu0 0.0
    %1300 = vmatprep.subr.mxu0 0.0
    %1301 = vmatpush1.msra.mxu0 0.0
    %1302 = vmatprep.subr.mxu0 0.0
    %1303 = vmatpush1.msra.mxu0 0.0
    %1304 = vmatprep.subr.mxu0 0.0
    %1305 = vmatpush1.msra.mxu0 0.0
    %1306 = vmatprep.mubr.f32.mxu0 0.0
    %1307 = vmatmul.mubr.f32.gmra.mrb[0].mxu0 %v1240
    %v1308 = vpop.f32.mrb[0].mxu0
    %v1309 = vadd.f32 0.0, %v1308
    %v1310 = vpop.f32.mrb[0].mxu0
    %1311 = vdwg.mxu0
    %v1312 = vrcp.pop %v1156
    %v1313 = vrcp.pop %v1159
    %v1314 = vmul.f32 %v1233, %v1312
    %v1315 = vmul.f32 %v1309, %v1313
    %v1317 = vsel %vm166, %v1314, 0
    %v1320 = vsel %vm166, %v1315, 0
    %1322 = vmatprep.subr.mxu0 0.0
    %1323 = vmatpush1.msra.mxu0 %v161
    %1324 = vmatprep.subr.mxu0 0.0
    %1325 = vmatpush1.msra.mxu0 0.0
    %1326 = vmatprep.subr.mxu0 0.0
    %1327 = vmatpush1.msra.mxu0 0.0
    %1328 = vmatprep.subr.mxu0 0.0
    %1329 = vmatpush1.msra.mxu0 0.0
    %1330 = vmatprep.subr.mxu0 0.0
    %1331 = vmatpush1.msra.mxu0 0.0
    %1332 = vmatprep.subr.mxu0 0.0
    %1333 = vmatpush1.msra.mxu0 0.0
    %1334 = vmatprep.subr.mxu0 0.0
    %1335 = vmatpush1.msra.mxu0 0.0
    %1336 = vmatprep.subr.mxu0 0.0
    %1337 = vmatpush1.msra.mxu0 0.0
    %1338 = vmatprep.subr.mxu0 0.0
    %1339 = vmatpush1.msra.mxu0 0.0
    %1340 = vmatprep.subr.mxu0 0.0
    %1341 = vmatpush1.msra.mxu0 0.0
    %1342 = vmatprep.subr.mxu0 0.0
    %1343 = vmatpush1.msra.mxu0 0.0
    %1344 = vmatprep.subr.mxu0 0.0
    %1345 = vmatpush1.msra.mxu0 0.0
    %1346 = vmatprep.subr.mxu0 0.0
    %1347 = vmatpush1.msra.mxu0 0.0
    %1348 = vmatprep.subr.mxu0 0.0
    %1349 = vmatpush1.msra.mxu0 0.0
    %1350 = vmatprep.subr.mxu0 0.0
    %1351 = vmatpush1.msra.mxu0 0.0
    %1352 = vmatprep.subr.mxu0 0.0
    %1353 = vmatpush1.msra.mxu0 0.0
    %1354 = vmatprep.subr.mxu0 0.0
    %1355 = vmatpush1.msra.mxu0 0.0
    %1356 = vmatprep.subr.mxu0 0.0
    %1357 = vmatpush1.msra.mxu0 0.0
    %1358 = vmatprep.subr.mxu0 0.0
    %1359 = vmatpush1.msra.mxu0 0.0
    %1360 = vmatprep.subr.mxu0 0.0
    %1361 = vmatpush1.msra.mxu0 0.0
    %1362 = vmatprep.subr.mxu0 0.0
    %1363 = vmatpush1.msra.mxu0 0.0
    %1364 = vmatprep.subr.mxu0 0.0
    %1365 = vmatpush1.msra.mxu0 0.0
    %1366 = vmatprep.subr.mxu0 0.0
    %1367 = vmatpush1.msra.mxu0 0.0
    %1368 = vmatprep.subr.mxu0 0.0
    %1369 = vmatpush1.msra.mxu0 0.0
    %1370 = vmatprep.subr.mxu0 0.0
    %1371 = vmatpush1.msra.mxu0 0.0
    %1372 = vmatprep.subr.mxu0 0.0
    %1373 = vmatpush1.msra.mxu0 0.0
    %1374 = vmatprep.subr.mxu0 0.0
    %1375 = vmatpush1.msra.mxu0 0.0
    %1376 = vmatprep.subr.mxu0 0.0
    %1377 = vmatpush1.msra.mxu0 0.0
    %1378 = vmatprep.subr.mxu0 0.0
    %1379 = vmatpush1.msra.mxu0 0.0
    %1380 = vmatprep.subr.mxu0 0.0
    %1381 = vmatpush1.msra.mxu0 0.0
    %1382 = vmatprep.subr.mxu0 0.0
    %1383 = vmatpush1.msra.mxu0 0.0
    %1384 = vmatprep.subr.mxu0 0.0
    %1385 = vmatpush1.msra.mxu0 0.0
    %1386 = vmatprep.mubr.f32.mxu0 0.0
    %1387 = vmatmul.mubr.f32.gmra.mrb[0].mxu0 %v1317
    %v1388 = vpop.f32.mrb[0].mxu0
    %v1389 = vadd.f32 0.0, %v1388
    %v1390 = vpop.f32.mrb[0].mxu0
    %1391 = vmatprep.mubr.f32.mxu0 0.0
    %1392 = vmatmul.mubr.f32.gmra.mrb[0].mxu0 %v1320
    %v1393 = vpop.f32.mrb[0].mxu0
    %v1394 = vadd.f32 0.0, %v1393
    %v1395 = vpop.f32.mrb[0].mxu0
    %1396 = vdwg.mxu0
    %v1397 = vadd.f32 %v978, %v1389
    %v1398 = vadd.f32 %v983, %v1394
    %1399 = vrot.lane.b32.xlu0 %v157, 104
    %v1400 = vpop.permute.xlu0 %1399
    %1401 = vrot.lane.b32.xlu0 %v149, 72
    %v1402 = vpop.permute.xlu0 %1401
    %v1403 = vsel %vm166, %v1400, 0
    %v1405 = vsel %vm166, %v1402, 0
    %1407 = vmatprep.subr.mxu0 0.0
    %1408 = vmatpush1.xpose.msra.mxu0 %v1405
    %1409 = vmatprep.subr.mxu0 0.0
    %1410 = vmatpush1.xpose.msra.mxu0 0.0
    %1411 = vmatprep.subr.mxu0 0.0
    %1412 = vmatpush1.xpose.msra.mxu0 0.0
    %1413 = vmatprep.subr.mxu0 0.0
    %1414 = vmatpush1.xpose.msra.mxu0 0.0
    %1415 = vmatprep.subr.mxu0 0.0
    %1416 = vmatpush1.xpose.msra.mxu0 0.0
    %1417 = vmatprep.subr.mxu0 0.0
    %1418 = vmatpush1.xpose.msra.mxu0 0.0
    %1419 = vmatprep.subr.mxu0 0.0
    %1420 = vmatpush1.xpose.msra.mxu0 0.0
    %1421 = vmatprep.subr.mxu0 0.0
    %1422 = vmatpush1.xpose.msra.mxu0 0.0
    %1423 = vmatprep.subr.mxu0 0.0
    %1424 = vmatpush1.xpose.msra.mxu0 0.0
    %1425 = vmatprep.subr.mxu0 0.0
    %1426 = vmatpush1.xpose.msra.mxu0 0.0
    %1427 = vmatprep.subr.mxu0 0.0
    %1428 = vmatpush1.xpose.msra.mxu0 0.0
    %1429 = vmatprep.subr.mxu0 0.0
    %1430 = vmatpush1.xpose.msra.mxu0 0.0
    %1431 = vmatprep.subr.mxu0 0.0
    %1432 = vmatpush1.xpose.msra.mxu0 0.0
    %1433 = vmatprep.subr.mxu0 0.0
    %1434 = vmatpush1.xpose.msra.mxu0 0.0
    %1435 = vmatprep.subr.mxu0 0.0
    %1436 = vmatpush1.xpose.msra.mxu0 0.0
    %1437 = vmatprep.subr.mxu0 0.0
    %1438 = vmatpush1.xpose.msra.mxu0 0.0
    %1439 = vmatprep.subr.mxu0 0.0
    %1440 = vmatpush1.xpose.msra.mxu0 0.0
    %1441 = vmatprep.subr.mxu0 0.0
    %1442 = vmatpush1.xpose.msra.mxu0 0.0
    %1443 = vmatprep.subr.mxu0 0.0
    %1444 = vmatpush1.xpose.msra.mxu0 0.0
    %1445 = vmatprep.subr.mxu0 0.0
    %1446 = vmatpush1.xpose.msra.mxu0 0.0
    %1447 = vmatprep.subr.mxu0 0.0
    %1448 = vmatpush1.xpose.msra.mxu0 0.0
    %1449 = vmatprep.subr.mxu0 0.0
    %1450 = vmatpush1.xpose.msra.mxu0 0.0
    %1451 = vmatprep.subr.mxu0 0.0
    %1452 = vmatpush1.xpose.msra.mxu0 0.0
    %1453 = vmatprep.subr.mxu0 0.0
    %1454 = vmatpush1.xpose.msra.mxu0 0.0
    %1455 = vmatprep.subr.mxu0 0.0
    %1456 = vmatpush1.xpose.msra.mxu0 0.0
    %1457 = vmatprep.subr.mxu0 0.0
    %1458 = vmatpush1.xpose.msra.mxu0 0.0
    %1459 = vmatprep.subr.mxu0 0.0
    %1460 = vmatpush1.xpose.msra.mxu0 0.0
    %1461 = vmatprep.subr.mxu0 0.0
    %1462 = vmatpush1.xpose.msra.mxu0 0.0
    %1463 = vmatprep.subr.mxu0 0.0
    %1464 = vmatpush1.xpose.msra.mxu0 0.0
    %1465 = vmatprep.subr.mxu0 0.0
    %1466 = vmatpush1.xpose.msra.mxu0 0.0
    %1467 = vmatprep.subr.mxu0 0.0
    %1468 = vmatpush1.xpose.msra.mxu0 0.0
    %1469 = vmatprep.subr.mxu0 0.0
    %1470 = vmatpush1.xpose.msra.mxu0 0.0
    %1471 = vmatprep.mubr.f32.mxu0 0.0
    %1472 = vmatmul.mubr.f32.gmra.mrb[0].mxu0 %v1403
    %v1473 = vpop.f32.mrb[0].mxu0
    %v1474 = vadd.f32 0.0, %v1473
    %v1475 = vpop.f32.mrb[0].mxu0
    %1476 = vdwg.mxu0
    %1477 = vrot.lane.b32.xlu0 %v158, 104
    %v1478 = vpop.permute.xlu0 %1477
    %1479 = vrot.lane.b32.xlu0 %v154, 72
    %v1480 = vpop.permute.xlu0 %1479
    %v1481 = vsel %vm166, %v1478, 0
    %v1483 = vsel %vm166, %v1480, 0
    %1485 = vmatprep.subr.mxu0 0.0
    %1486 = vmatpush1.xpose.msra.mxu0 %v1483
    %1487 = vmatprep.subr.mxu0 0.0
    %1488 = vmatpush1.xpose.msra.mxu0 0.0
    %1489 = vmatprep.subr.mxu0 0.0
    %1490 = vmatpush1.xpose.msra.mxu0 0.0
    %1491 = vmatprep.subr.mxu0 0.0
    %1492 = vmatpush1.xpose.msra.mxu0 0.0
    %1493 = vmatprep.subr.mxu0 0.0
    %1494 = vmatpush1.xpose.msra.mxu0 0.0
    %1495 = vmatprep.subr.mxu0 0.0
    %1496 = vmatpush1.xpose.msra.mxu0 0.0
    %1497 = vmatprep.subr.mxu0 0.0
    %1498 = vmatpush1.xpose.msra.mxu0 0.0
    %1499 = vmatprep.subr.mxu0 0.0
    %1500 = vmatpush1.xpose.msra.mxu0 0.0
    %1501 = vmatprep.subr.mxu0 0.0
    %1502 = vmatpush1.xpose.msra.mxu0 0.0
    %1503 = vmatprep.subr.mxu0 0.0
    %1504 = vmatpush1.xpose.msra.mxu0 0.0
    %1505 = vmatprep.subr.mxu0 0.0
    %1506 = vmatpush1.xpose.msra.mxu0 0.0
    %1507 = vmatprep.subr.mxu0 0.0
    %1508 = vmatpush1.xpose.msra.mxu0 0.0
    %1509 = vmatprep.subr.mxu0 0.0
    %1510 = vmatpush1.xpose.msra.mxu0 0.0
    %1511 = vmatprep.subr.mxu0 0.0
    %1512 = vmatpush1.xpose.msra.mxu0 0.0
    %1513 = vmatprep.subr.mxu0 0.0
    %1514 = vmatpush1.xpose.msra.mxu0 0.0
    %1515 = vmatprep.subr.mxu0 0.0
    %1516 = vmatpush1.xpose.msra.mxu0 0.0
    %1517 = vmatprep.subr.mxu0 0.0
    %1518 = vmatpush1.xpose.msra.mxu0 0.0
    %1519 = vmatprep.subr.mxu0 0.0
    %1520 = vmatpush1.xpose.msra.mxu0 0.0
    %1521 = vmatprep.subr.mxu0 0.0
    %1522 = vmatpush1.xpose.msra.mxu0 0.0
    %1523 = vmatprep.subr.mxu0 0.0
    %1524 = vmatpush1.xpose.msra.mxu0 0.0
    %1525 = vmatprep.subr.mxu0 0.0
    %1526 = vmatpush1.xpose.msra.mxu0 0.0
    %1527 = vmatprep.subr.mxu0 0.0
    %1528 = vmatpush1.xpose.msra.mxu0 0.0
    %1529 = vmatprep.subr.mxu0 0.0
    %1530 = vmatpush1.xpose.msra.mxu0 0.0
    %1531 = vmatprep.subr.mxu0 0.0
    %1532 = vmatpush1.xpose.msra.mxu0 0.0
    %1533 = vmatprep.subr.mxu0 0.0
    %1534 = vmatpush1.xpose.msra.mxu0 0.0
    %1535 = vmatprep.subr.mxu0 0.0
    %1536 = vmatpush1.xpose.msra.mxu0 0.0
    %1537 = vmatprep.subr.mxu0 0.0
    %1538 = vmatpush1.xpose.msra.mxu0 0.0
    %1539 = vmatprep.subr.mxu0 0.0
    %1540 = vmatpush1.xpose.msra.mxu0 0.0
    %1541 = vmatprep.subr.mxu0 0.0
    %1542 = vmatpush1.xpose.msra.mxu0 0.0
    %1543 = vmatprep.subr.mxu0 0.0
    %1544 = vmatpush1.xpose.msra.mxu0 0.0
    %1545 = vmatprep.subr.mxu0 0.0
    %1546 = vmatpush1.xpose.msra.mxu0 0.0
    %1547 = vmatprep.subr.mxu0 0.0
    %1548 = vmatpush1.xpose.msra.mxu0 0.0
    %1549 = vmatprep.mubr.f32.mxu0 0.0
    %1550 = vmatmul.mubr.f32.gmra.mrb[0].mxu0 %v1481
    %v1551 = vpop.f32.mrb[0].mxu0
    %v1552 = vadd.f32 0.0, %v1551
    %v1553 = vpop.f32.mrb[0].mxu0
    %1554 = vdwg.mxu0
    %v1555 = vsel %vm166, %v1474, -inf
    %1556 = vmax.xlane.f32.xlu0 %v1555
    %v1557 = vpop.xlane.xlu0 %1556
    %v1558 = vsel %vm166, %v1552, -inf
    %1559 = vmax.xlane.f32.xlu0 %v1558
    %v1560 = vpop.xlane.xlu0 %1559
    %v1561 = vsub.f32 %v1474, %v1557
    %v1562 = vsub.f32 %v1552, %v1560
    %v1563 = vmul.f32 %v1561, 1.442695
    %v1564 = vpow.pop %v1563
    %v1565 = vmul.f32 %v1562, 1.442695
    %v1566 = vpow.pop %v1565
    %v1567 = vsel %vm166, %v1564, 0.0
    %1568 = vadd.xlane.f32.xlu0 %v1567
    %v1569 = vpop.xlane.xlu0 %1568
    %v1570 = vsel %vm166, %v1566, 0.0
    %1571 = vadd.xlane.f32.xlu0 %v1570
    %v1572 = vpop.xlane.xlu0 %1571
    %1573 = vrot.lane.b32.xlu0 %v149, 40
    %v1574 = vpop.permute.xlu0 %1573
    %v1577 = vsel %vm166, %v1564, 0
    %1579 = vmatprep.subr.mxu0 0.0
    %1580 = vmatpush1.msra.mxu0 %v1574
    %1581 = vmatprep.subr.mxu0 0.0
    %1582 = vmatpush1.msra.mxu0 0.0
    %1583 = vmatprep.subr.mxu0 0.0
    %1584 = vmatpush1.msra.mxu0 0.0
    %1585 = vmatprep.subr.mxu0 0.0
    %1586 = vmatpush1.msra.mxu0 0.0
    %1587 = vmatprep.subr.mxu0 0.0
    %1588 = vmatpush1.msra.mxu0 0.0
    %1589 = vmatprep.subr.mxu0 0.0
    %1590 = vmatpush1.msra.mxu0 0.0
    %1591 = vmatprep.subr.mxu0 0.0
    %1592 = vmatpush1.msra.mxu0 0.0
    %1593 = vmatprep.subr.mxu0 0.0
    %1594 = vmatpush1.msra.mxu0 0.0
    %1595 = vmatprep.subr.mxu0 0.0
    %1596 = vmatpush1.msra.mxu0 0.0
    %1597 = vmatprep.subr.mxu0 0.0
    %1598 = vmatpush1.msra.mxu0 0.0
    %1599 = vmatprep.subr.mxu0 0.0
    %1600 = vmatpush1.msra.mxu0 0.0
    %1601 = vmatprep.subr.mxu0 0.0
    %1602 = vmatpush1.msra.mxu0 0.0
    %1603 = vmatprep.subr.mxu0 0.0
    %1604 = vmatpush1.msra.mxu0 0.0
    %1605 = vmatprep.subr.mxu0 0.0
    %1606 = vmatpush1.msra.mxu0 0.0
    %1607 = vmatprep.subr.mxu0 0.0
    %1608 = vmatpush1.msra.mxu0 0.0
    %1609 = vmatprep.subr.mxu0 0.0
    %1610 = vmatpush1.msra.mxu0 0.0
    %1611 = vmatprep.subr.mxu0 0.0
    %1612 = vmatpush1.msra.mxu0 0.0
    %1613 = vmatprep.subr.mxu0 0.0
    %1614 = vmatpush1.msra.mxu0 0.0
    %1615 = vmatprep.subr.mxu0 0.0
    %1616 = vmatpush1.msra.mxu0 0.0
    %1617 = vmatprep.subr.mxu0 0.0
    %1618 = vmatpush1.msra.mxu0 0.0
    %1619 = vmatprep.subr.mxu0 0.0
    %1620 = vmatpush1.msra.mxu0 0.0
    %1621 = vmatprep.subr.mxu0 0.0
    %1622 = vmatpush1.msra.mxu0 0.0
    %1623 = vmatprep.subr.mxu0 0.0
    %1624 = vmatpush1.msra.mxu0 0.0
    %1625 = vmatprep.subr.mxu0 0.0
    %1626 = vmatpush1.msra.mxu0 0.0
    %1627 = vmatprep.subr.mxu0 0.0
    %1628 = vmatpush1.msra.mxu0 0.0
    %1629 = vmatprep.subr.mxu0 0.0
    %1630 = vmatpush1.msra.mxu0 0.0
    %1631 = vmatprep.subr.mxu0 0.0
    %1632 = vmatpush1.msra.mxu0 0.0
    %1633 = vmatprep.subr.mxu0 0.0
    %1634 = vmatpush1.msra.mxu0 0.0
    %1635 = vmatprep.subr.mxu0 0.0
    %1636 = vmatpush1.msra.mxu0 0.0
    %1637 = vmatprep.subr.mxu0 0.0
    %1638 = vmatpush1.msra.mxu0 0.0
    %1639 = vmatprep.subr.mxu0 0.0
    %1640 = vmatpush1.msra.mxu0 0.0
    %1641 = vmatprep.subr.mxu0 0.0
    %1642 = vmatpush1.msra.mxu0 0.0
    %1643 = vmatprep.mubr.f32.mxu0 0.0
    %1644 = vmatmul.mubr.f32.gmra.mrb[0].mxu0 %v1577
    %v1645 = vpop.f32.mrb[0].mxu0
    %v1646 = vadd.f32 0.0, %v1645
    %v1647 = vpop.f32.mrb[0].mxu0
    %1648 = vdwg.mxu0
    %1649 = vrot.lane.b32.xlu0 %v154, 40
    %v1650 = vpop.permute.xlu0 %1649
    %v1653 = vsel %vm166, %v1566, 0
    %1655 = vmatprep.subr.mxu0 0.0
    %1656 = vmatpush1.msra.mxu0 %v1650
    %1657 = vmatprep.subr.mxu0 0.0
    %1658 = vmatpush1.msra.mxu0 0.0
    %1659 = vmatprep.subr.mxu0 0.0
    %1660 = vmatpush1.msra.mxu0 0.0
    %1661 = vmatprep.subr.mxu0 0.0
    %1662 = vmatpush1.msra.mxu0 0.0
    %1663 = vmatprep.subr.mxu0 0.0
    %1664 = vmatpush1.msra.mxu0 0.0
    %1665 = vmatprep.subr.mxu0 0.0
    %1666 = vmatpush1.msra.mxu0 0.0
    %1667 = vmatprep.subr.mxu0 0.0
    %1668 = vmatpush1.msra.mxu0 0.0
    %1669 = vmatprep.subr.mxu0 0.0
    %1670 = vmatpush1.msra.mxu0 0.0
    %1671 = vmatprep.subr.mxu0 0.0
    %1672 = vmatpush1.msra.mxu0 0.0
    %1673 = vmatprep.subr.mxu0 0.0
    %1674 = vmatpush1.msra.mxu0 0.0
    %1675 = vmatprep.subr.mxu0 0.0
    %1676 = vmatpush1.msra.mxu0 0.0
    %1677 = vmatprep.subr.mxu0 0.0
    %1678 = vmatpush1.msra.mxu0 0.0
    %1679 = vmatprep.subr.mxu0 0.0
    %1680 = vmatpush1.msra.mxu0 0.0
    %1681 = vmatprep.subr.mxu0 0.0
    %1682 = vmatpush1.msra.mxu0 0.0
    %1683 = vmatprep.subr.mxu0 0.0
    %1684 = vmatpush1.msra.mxu0 0.0
    %1685 = vmatprep.subr.mxu0 0.0
    %1686 = vmatpush1.msra.mxu0 0.0
    %1687 = vmatprep.subr.mxu0 0.0
    %1688 = vmatpush1.msra.mxu0 0.0
    %1689 = vmatprep.subr.mxu0 0.0
    %1690 = vmatpush1.msra.mxu0 0.0
    %1691 = vmatprep.subr.mxu0 0.0
    %1692 = vmatpush1.msra.mxu0 0.0
    %1693 = vmatprep.subr.mxu0 0.0
    %1694 = vmatpush1.msra.mxu0 0.0
    %1695 = vmatprep.subr.mxu0 0.0
    %1696 = vmatpush1.msra.mxu0 0.0
    %1697 = vmatprep.subr.mxu0 0.0
    %1698 = vmatpush1.msra.mxu0 0.0
    %1699 = vmatprep.subr.mxu0 0.0
    %1700 = vmatpush1.msra.mxu0 0.0
    %1701 = vmatprep.subr.mxu0 0.0
    %1702 = vmatpush1.msra.mxu0 0.0
    %1703 = vmatprep.subr.mxu0 0.0
    %1704 = vmatpush1.msra.mxu0 0.0
    %1705 = vmatprep.subr.mxu0 0.0
    %1706 = vmatpush1.msra.mxu0 0.0
    %1707 = vmatprep.subr.mxu0 0.0
    %1708 = vmatpush1.msra.mxu0 0.0
    %1709 = vmatprep.subr.mxu0 0.0
    %1710 = vmatpush1.msra.mxu0 0.0
    %1711 = vmatprep.subr.mxu0 0.0
    %1712 = vmatpush1.msra.mxu0 0.0
    %1713 = vmatprep.subr.mxu0 0.0
    %1714 = vmatpush1.msra.mxu0 0.0
    %1715 = vmatprep.subr.mxu0 0.0
    %1716 = vmatpush1.msra.mxu0 0.0
    %1717 = vmatprep.subr.mxu0 0.0
    %1718 = vmatpush1.msra.mxu0 0.0
    %1719 = vmatprep.mubr.f32.mxu0 0.0
    %1720 = vmatmul.mubr.f32.gmra.mrb[0].mxu0 %v1653
    %v1721 = vpop.f32.mrb[0].mxu0
    %v1722 = vadd.f32 0.0, %v1721
    %v1723 = vpop.f32.mrb[0].mxu0
    %1724 = vdwg.mxu0
    %v1725 = vrcp.pop %v1569
    %v1726 = vrcp.pop %v1572
    %v1727 = vmul.f32 %v1646, %v1725
    %v1728 = vmul.f32 %v1722, %v1726
    %v1730 = vsel %vm166, %v1727, 0
    %v1733 = vsel %vm166, %v1728, 0
    %1735 = vmatprep.subr.mxu0 0.0
    %1736 = vmatpush1.msra.mxu0 %v162
    %1737 = vmatprep.subr.mxu0 0.0
    %1738 = vmatpush1.msra.mxu0 0.0
    %1739 = vmatprep.subr.mxu0 0.0
    %1740 = vmatpush1.msra.mxu0 0.0
    %1741 = vmatprep.subr.mxu0 0.0
    %1742 = vmatpush1.msra.mxu0 0.0
    %1743 = vmatprep.subr.mxu0 0.0
    %1744 = vmatpush1.msra.mxu0 0.0
    %1745 = vmatprep.subr.mxu0 0.0
    %1746 = vmatpush1.msra.mxu0 0.0
    %1747 = vmatprep.subr.mxu0 0.0
    %1748 = vmatpush1.msra.mxu0 0.0
    %1749 = vmatprep.subr.mxu0 0.0
    %1750 = vmatpush1.msra.mxu0 0.0
    %1751 = vmatprep.subr.mxu0 0.0
    %1752 = vmatpush1.msra.mxu0 0.0
    %1753 = vmatprep.subr.mxu0 0.0
    %1754 = vmatpush1.msra.mxu0 0.0
    %1755 = vmatprep.subr.mxu0 0.0
    %1756 = vmatpush1.msra.mxu0 0.0
    %1757 = vmatprep.subr.mxu0 0.0
    %1758 = vmatpush1.msra.mxu0 0.0
    %1759 = vmatprep.subr.mxu0 0.0
    %1760 = vmatpush1.msra.mxu0 0.0
    %1761 = vmatprep.subr.mxu0 0.0
    %1762 = vmatpush1.msra.mxu0 0.0
    %1763 = vmatprep.subr.mxu0 0.0
    %1764 = vmatpush1.msra.mxu0 0.0
    %1765 = vmatprep.subr.mxu0 0.0
    %1766 = vmatpush1.msra.mxu0 0.0
    %1767 = vmatprep.subr.mxu0 0.0
    %1768 = vmatpush1.msra.mxu0 0.0
    %1769 = vmatprep.subr.mxu0 0.0
    %1770 = vmatpush1.msra.mxu0 0.0
    %1771 = vmatprep.subr.mxu0 0.0
    %1772 = vmatpush1.msra.mxu0 0.0
    %1773 = vmatprep.subr.mxu0 0.0
    %1774 = vmatpush1.msra.mxu0 0.0
    %1775 = vmatprep.subr.mxu0 0.0
    %1776 = vmatpush1.msra.mxu0 0.0
    %1777 = vmatprep.subr.mxu0 0.0
    %1778 = vmatpush1.msra.mxu0 0.0
    %1779 = vmatprep.subr.mxu0 0.0
    %1780 = vmatpush1.msra.mxu0 0.0
    %1781 = vmatprep.subr.mxu0 0.0
    %1782 = vmatpush1.msra.mxu0 0.0
    %1783 = vmatprep.subr.mxu0 0.0
    %1784 = vmatpush1.msra.mxu0 0.0
    %1785 = vmatprep.subr.mxu0 0.0
    %1786 = vmatpush1.msra.mxu0 0.0
    %1787 = vmatprep.subr.mxu0 0.0
    %1788 = vmatpush1.msra.mxu0 0.0
    %1789 = vmatprep.subr.mxu0 0.0
    %1790 = vmatpush1.msra.mxu0 0.0
    %1791 = vmatprep.subr.mxu0 0.0
    %1792 = vmatpush1.msra.mxu0 0.0
    %1793 = vmatprep.subr.mxu0 0.0
    %1794 = vmatpush1.msra.mxu0 0.0
    %1795 = vmatprep.subr.mxu0 0.0
    %1796 = vmatpush1.msra.mxu0 0.0
    %1797 = vmatprep.subr.mxu0 0.0
    %1798 = vmatpush1.msra.mxu0 0.0
    %1799 = vmatprep.mubr.f32.mxu0 0.0
    %1800 = vmatmul.mubr.f32.gmra.mrb[0].mxu0 %v1730
    %v1801 = vpop.f32.mrb[0].mxu0
    %v1802 = vadd.f32 0.0, %v1801
    %v1803 = vpop.f32.mrb[0].mxu0
    %1804 = vmatprep.mubr.f32.mxu0 0.0
    %1805 = vmatmul.mubr.f32.gmra.mrb[0].mxu0 %v1733
    %v1806 = vpop.f32.mrb[0].mxu0
    %v1807 = vadd.f32 0.0, %v1806
    %v1808 = vpop.f32.mrb[0].mxu0
    %1809 = vdwg.mxu0
    %v1810 = vadd.f32 %v1397, %v1802
    %v1811 = vadd.f32 %v1398, %v1807
    %v1812 = vld [vmem:[%s4] sm:$0x1]
    %v1814 = vlaneseq
    %v1815 = vshrl.u32 %v1814, 7
    %v1816 = vsub.s32 0, %v1815
    %v1817 = vrot.slane %v1812, %v1816
    %v1819 = vadd.f32 %v1810, %v1817
    %v1820 = vadd.f32 %v1811, %v1817
    %1821 = vst.msk [vmem:[#allocation8] sm:$0xff] %vm75, %v1819
    %1822 = vst.msk [vmem:[#allocation8 + $0x8] sm:$0xff] %vm75, %v1820
    // Predicated region
    $region34: #{tpu_custom_call.1} parent=1 // pred_check
      _
    $region35: #{tpu_custom_call.1} parent=1 // pred_check_branch
      %1824 = sbr.rel (0) target = $region37
    $region36: #{tpu_custom_call.1} parent=1 // pred_region
      %s1826 = ssub.s32 256, 256
      %1827 = vsyncadd [#allocation4], %s1826
      %s1828 = sshll.u32 [#allocation8], 4
      %s1829 = int_to_ptr.vmem [resolvable:$true] %s1828
      %1834 = dma.vmem_to_hbm [thread:$0]  %s1829, 256, %s5, [#allocation4], 128, 128, 8
    $region37: #{tpu_custom_call.1} parent=1 // pred_fallthru
      _
    // Predicated region
    $region38: #{tpu_custom_call.1} parent=1 // pred_check
      _
    $region39: #{tpu_custom_call.1} parent=1 // pred_check_branch
      %1836 = sbr.rel (0) target = $region41
    $region40: #{tpu_custom_call.1} parent=1 // pred_region
      %1837 = dma.done [#allocation4], 256
    $region41: #{tpu_custom_call.1} parent=1 // pred_fallthru
      _
    %1838 = vsyncpa [#allocation3], 1
    %1839 = vsyncpa [#allocation6], 1
    %1840 = vsyncpa [#allocation4], 1

</llo_original>
